<compile_context>
chip_gen: v6e
topology: v6e:2x2x1
jax: 0.10.0
libtpu: 0.0.40
codegen_flags: <defaults>
</compile_context>

<pallas_src>
import functools

import jax
import jax.numpy as jnp
import numpy as np
from jax.experimental import pallas as pl
from jax.experimental.pallas import tpu as pltpu


def gat_gate_kernel(*refs, apply_proj):
    if apply_proj:
        (x_ref, adj_ref, wmd_ref, ww_ref, bias_ref, a_ref, wg_ref, bg_ref,
         out_ref) = refs
    else:
        (x_ref, adj_ref, ww_ref, bias_ref, a_ref, wg_ref, bg_ref,
         out_ref) = refs

    bt, n, c_in = x_ref.shape
    f = out_ref.shape[2]

    # ---- shared-weight projections on the flattened (Bt*N, C) slab ----
    x2 = x_ref[...].reshape(bt * n, c_in)
    if apply_proj:
        x2 = (jnp.dot(x2, wmd_ref[...], preferred_element_type=jnp.float32)
              + bias_ref[0:1, :])
        bw_row = bias_ref[1:2, :]
    else:
        bw_row = bias_ref[0:1, :]
    h2 = (jnp.dot(x2, ww_ref[...], preferred_element_type=jnp.float32)
          + bw_row)

    # a_ref holds A_sym = A + A^T, so e = h A_sym h^T == (hA)h^T + ((hA)h^T)^T.
    hA2 = jnp.dot(h2, a_ref[...], preferred_element_type=jnp.float32)

    h3 = h2.reshape(bt, n, f)
    hA3 = hA2.reshape(bt, n, f)
    adj3 = adj_ref[...]

    # e[b, j, k] = sum_l hA[b, j, l] * h[b, k, l]   (contract last dims, no h^T)
    e = jnp.einsum("bjl,bkl->bjk", hA3, h3,
                   preferred_element_type=jnp.float32)

    # Masked softmax over PyTorch dim=1 (the "j" axis), then re-mask with adj.
    att = jnp.where(adj3 > 0, e, -9.0e15)          # scalar fill, no full_like
    m = jnp.max(att, axis=1, keepdims=True)
    p = jnp.exp(att - m)
    s = jnp.sum(p, axis=1, keepdims=True)
    # approx=True would move this onto the EUP slot, but costs ~1e-4 relative
    # error; keep the exact path so the f32 reference check stays tight.
    att = p * pl.reciprocal(s, approx=False)
    att = att * adj3

    # h' = relu(attention @ h)
    hp3 = jnp.maximum(
        jnp.einsum("bij,bjk->bik", att, h3,
                   preferred_element_type=jnp.float32), 0.0)
    hp2 = hp3.reshape(bt * n, f)

    # Gate: sigmoid(cat([x, h']) @ Wg^T + bg) as a VPU multiply + lane reduce
    # (an output-width-1 matmul would waste 127/128 MXU lanes).
    g = jnp.sum(x2 * wg_ref[0:1, :] + hp2 * wg_ref[1:2, :],
                axis=-1, keepdims=True) + bg_ref[0]
    coeff = jax.nn.sigmoid(g)

    out2 = coeff * x2 + (1.0 - coeff) * hp2
    out_ref[...] = out2.reshape(bt, n, f).astype(out_ref.dtype)


def gat_gate(x, adj, params, graphs_per_step=None):
    """params (PyTorch conventions):
       Wmd (F, C_in), bmd (F,), Ww (F, F), bw (F,), A (F, F), Wg (1, 2F), bg (1,)."""
    x = jnp.asarray(x, jnp.float32)
    adj = jnp.asarray(adj, jnp.float32)
    B, N, C_in = x.shape
    F_out = params["Ww"].shape[0]
    apply_proj = (C_in != F_out)

    # Graphs per grid step: batch enough graphs to amortise per-step pipeline
    # overhead, but keep >= 2 grid steps when B >= 2 so both v7x TensorCores
    # get work on the "parallel" batch axis.
    if graphs_per_step is None:
        graphs_per_step = 8
    Bt = max(1, min(graphs_per_step, B // 2)) if B >= 2 else 1
    steps = (B + Bt - 1) // Bt
    B_pad = steps * Bt
    if B_pad != B:  # pad with empty graphs (all-zero adj is safe); sliced off below
        x = jnp.pad(x, ((0, B_pad - B), (0, 0), (0, 0)))
        adj = jnp.pad(adj, ((0, B_pad - B), (0, 0), (0, 0)))

    # ---- wrapper-side weight preprocessing (keeps the kernel lean) ----
    ww_t = jnp.asarray(params["Ww"], jnp.float32).T              # (F, F)
    a = jnp.asarray(params["A"], jnp.float32)
    a_sym = a + a.T                                              # folds e + e^T
    wg_flat = jnp.asarray(params["Wg"], jnp.float32).reshape(2 * F_out)
    wg = jnp.stack([wg_flat[:F_out], wg_flat[F_out:]], axis=0)   # (2, F)
    bg = jnp.asarray(params["bg"], jnp.float32).reshape(1)       # SMEM scalar

    batch_spec = lambda shape: pl.BlockSpec(shape, lambda s: (s, 0, 0))
    weight_spec = lambda shape: pl.BlockSpec(shape, lambda s: (0, 0))

    args = [x, adj]
    in_specs = [batch_spec((Bt, N, C_in)), batch_spec((Bt, N, N))]
    if apply_proj:
        wmd_t = jnp.asarray(params["Wmd"], jnp.float32).T        # (C_in, F)
        biases = jnp.stack([jnp.asarray(params["bmd"], jnp.float32),
                            jnp.asarray(params["bw"], jnp.float32)], axis=0)
        args.append(wmd_t)
        in_specs.append(weight_spec((C_in, F_out)))
    else:
        biases = jnp.asarray(params["bw"], jnp.float32).reshape(1, F_out)
    args += [ww_t, biases, a_sym, wg, bg]
    in_specs += [
        weight_spec((F_out, F_out)),                         # Ww^T
        weight_spec(biases.shape),                           # packed biases
        weight_spec((F_out, F_out)),                         # A + A^T
        weight_spec((2, F_out)),                             # gate rows [x, h']
        pl.BlockSpec(memory_space=pltpu.MemorySpace.SMEM),   # gate bias scalar
    ]

    kernel = functools.partial(gat_gate_kernel, apply_proj=apply_proj)

    out = pl.pallas_call(
        kernel,
        out_shape=jax.ShapeDtypeStruct((B_pad, N, F_out), jnp.float32),
        grid=(steps,),
        in_specs=in_specs,
        out_specs=pl.BlockSpec((Bt, N, F_out), lambda s: (s, 0, 0)),
        compiler_params=pltpu.CompilerParams(
            dimension_semantics=("parallel",)),
    )(*args)
    return out[:B]


def gat_gate_reference(x, adj, params, precision=None):
    """Pure-JAX replica of the PyTorch forward (for correctness checking)."""
    F_out = params["Ww"].shape[0]
    if x.shape[-1] != F_out:
        x = jnp.matmul(x, params["Wmd"].T, precision=precision) + params["bmd"]
    h = jnp.matmul(x, params["Ww"].T, precision=precision) + params["bw"]
    hA = jnp.matmul(h, params["A"], precision=precision)
    e = jnp.einsum("ijl,ikl->ijk", hA, h, precision=precision)
    e = e + jnp.transpose(e, (0, 2, 1))
    att = jnp.where(adj > 0, e, -9.0e15)
    att = jax.nn.softmax(att, axis=1)
    att = att * adj
    hp = jax.nn.relu(jnp.einsum("aij,ajk->aik", att, h, precision=precision))
    gate_in = jnp.concatenate([x, hp], axis=-1)
    coeff = jax.nn.sigmoid(
        jnp.matmul(gate_in, params["Wg"].T, precision=precision) + params["bg"])
    return coeff * x + (1.0 - coeff) * hp


if __name__ == "__main__":
    B, N, n_in, n_out = 8, 16, 16, 32   # small; gives Bt=4, a 2-step grid

    key = jax.random.PRNGKey(0)
    ks = jax.random.split(key, 10)

    x = jax.random.normal(ks[0], (B, N, n_in), dtype=jnp.float32)
    adj = (jax.random.uniform(ks[1], (B, N, N)) > 0.5).astype(jnp.float32)
    adj = jnp.maximum(adj, jnp.transpose(adj, (0, 2, 1)))          # symmetric
    adj = jnp.maximum(adj, jnp.eye(N, dtype=jnp.float32)[None])    # self loops

    # Deterministic synthetic parameters (shapes from GAT_gate.__init__).
    # __init__ sets A to zeros; random values give a non-degenerate test.
    params = {
        "Wmd": 0.1 * jax.random.normal(ks[2], (n_out, n_in), jnp.float32),
        "bmd": 0.1 * jax.random.normal(ks[3], (n_out,), jnp.float32),
        "Ww":  0.1 * jax.random.normal(ks[4], (n_out, n_out), jnp.float32),
        "bw":  0.1 * jax.random.normal(ks[5], (n_out,), jnp.float32),
        "A":   0.1 * jax.random.normal(ks[6], (n_out, n_out), jnp.float32),
        "Wg":  0.1 * jax.random.normal(ks[7], (1, 2 * n_out), jnp.float32),
        "bg":  0.1 * jax.random.normal(ks[8], (1,), jnp.float32),
    }

    out = jax.block_until_ready(gat_gate(x, adj, params))

    # Correctness: compare against a highest-precision f32 reference. The
    # tolerance floor adapts to the backend's own f32-matmul precision noise
    # (difference between default- and highest-precision XLA references), so
    # the check stays at 1e-5 when f32 dots are exact and does not spuriously
    # fail if the backend lowers f32 dots through bf16 passes.
    ref_hi = jax.block_until_ready(
        gat_gate_reference(x, adj, params, precision="highest"))
    ref_lo = jax.block_until_ready(
        gat_gate_reference(x, adj, params, precision=None))
    noise = float(jnp.max(jnp.abs(ref_hi - ref_lo)))
    atol = max(1e-5, 4.0 * noise)
    np.testing.assert_allclose(np.asarray(out), np.asarray(ref_hi),
                               rtol=1e-5, atol=atol)
    print("KERNEL_OK")
</pallas_src>

<mosaic_0001>
module attributes {stable_mosaic.version = 11 : i64} {
  func.func @gat_gate_kernel(%arg0: i32, %arg1: memref<4x16x16xf32, #tpu.memory_space<vmem>>, %arg2: memref<4x16x16xf32, #tpu.memory_space<vmem>>, %arg3: memref<16x32xf32, #tpu.memory_space<vmem>>, %arg4: memref<32x32xf32, #tpu.memory_space<vmem>>, %arg5: memref<2x32xf32, #tpu.memory_space<vmem>>, %arg6: memref<32x32xf32, #tpu.memory_space<vmem>>, %arg7: memref<2x32xf32, #tpu.memory_space<vmem>>, %arg8: memref<1xf32, #tpu.memory_space<smem>>, %arg9: memref<4x16x32xf32, #tpu.memory_space<vmem>>) attributes {dimension_semantics = [#tpu.dimension_semantics<parallel>], iteration_bounds = array<i64: 2>, scalar_prefetch = 0 : i64, scratch_operands = 0 : i64, tpu.core_type = #tpu.core_type<tc>, window_params = [{transform_indices = @transform_0, window_bounds = array<i64: 4, 16, 16>}, {transform_indices = @transform_1, window_bounds = array<i64: 4, 16, 16>}, {pipeline_mode = #tpu.pipeline_mode<synchronous>, transform_indices = @transform_2, window_bounds = array<i64: 16, 32>}, {pipeline_mode = #tpu.pipeline_mode<synchronous>, transform_indices = @transform_3, window_bounds = array<i64: 32, 32>}, {pipeline_mode = #tpu.pipeline_mode<synchronous>, transform_indices = @transform_4, window_bounds = array<i64: 2, 32>}, {pipeline_mode = #tpu.pipeline_mode<synchronous>, transform_indices = @transform_5, window_bounds = array<i64: 32, 32>}, {pipeline_mode = #tpu.pipeline_mode<synchronous>, transform_indices = @transform_6, window_bounds = array<i64: 2, 32>}, {transform_indices = @transform_7, window_bounds = array<i64: 1>}, {transform_indices = @transform_8, window_bounds = array<i64: 4, 16, 32>}]} {
    %c0 = arith.constant 0 : index
    %c0_0 = arith.constant 0 : index
    %c0_1 = arith.constant 0 : index
    %0 = vector.load %arg1[%c0, %c0_0, %c0_1] : memref<4x16x16xf32, #tpu.memory_space<vmem>>, vector<4x16x16xf32>
    %1 = vector.shape_cast %0 : vector<4x16x16xf32> to vector<64x16xf32>
    %c0_2 = arith.constant 0 : index
    %c0_3 = arith.constant 0 : index
    %2 = vector.load %arg3[%c0_2, %c0_3] : memref<16x32xf32, #tpu.memory_space<vmem>>, vector<16x32xf32>
    %cst = arith.constant dense<0.000000e+00> : vector<64x32xf32>
    %3 = tpu.matmul %1, %2, %cst {dimension_numbers = #tpu.dot_dimension_numbers<[1], [0], [0], [1], [0, 0, 1, 1], [], []>} : vector<64x16xf32>, vector<16x32xf32>, vector<64x32xf32> -> vector<64x32xf32>
    %c0_4 = arith.constant 0 : index
    %c0_5 = arith.constant 0 : index
    %4 = vector.load %arg5[%c0_4, %c0_5] : memref<2x32xf32, #tpu.memory_space<vmem>>, vector<1x32xf32>
    %5 = vector.broadcast %4 : vector<1x32xf32> to vector<64x32xf32>
    %6 = arith.addf %3, %5 : vector<64x32xf32>
    %c1 = arith.constant 1 : index
    %c0_6 = arith.constant 0 : index
    %7 = vector.load %arg5[%c1, %c0_6] : memref<2x32xf32, #tpu.memory_space<vmem>>, vector<1x32xf32>
    %c0_7 = arith.constant 0 : index
    %c0_8 = arith.constant 0 : index
    %8 = vector.load %arg4[%c0_7, %c0_8] : memref<32x32xf32, #tpu.memory_space<vmem>>, vector<32x32xf32>
    %cst_9 = arith.constant dense<0.000000e+00> : vector<64x32xf32>
    %9 = tpu.matmul %6, %8, %cst_9 {dimension_numbers = #tpu.dot_dimension_numbers<[1], [0], [0], [1], [0, 0, 1, 1], [], []>} : vector<64x32xf32>, vector<32x32xf32>, vector<64x32xf32> -> vector<64x32xf32>
    %10 = vector.broadcast %7 : vector<1x32xf32> to vector<64x32xf32>
    %11 = arith.addf %9, %10 : vector<64x32xf32>
    %c0_10 = arith.constant 0 : index
    %c0_11 = arith.constant 0 : index
    %12 = vector.load %arg6[%c0_10, %c0_11] : memref<32x32xf32, #tpu.memory_space<vmem>>, vector<32x32xf32>
    %cst_12 = arith.constant dense<0.000000e+00> : vector<64x32xf32>
    %13 = tpu.matmul %11, %12, %cst_12 {dimension_numbers = #tpu.dot_dimension_numbers<[1], [0], [0], [1], [0, 0, 1, 1], [], []>} : vector<64x32xf32>, vector<32x32xf32>, vector<64x32xf32> -> vector<64x32xf32>
    %14 = vector.shape_cast %11 : vector<64x32xf32> to vector<4x16x32xf32>
    %15 = vector.shape_cast %13 : vector<64x32xf32> to vector<4x16x32xf32>
    %c0_13 = arith.constant 0 : index
    %c0_14 = arith.constant 0 : index
    %c0_15 = arith.constant 0 : index
    %16 = vector.load %arg2[%c0_13, %c0_14, %c0_15] : memref<4x16x16xf32, #tpu.memory_space<vmem>>, vector<4x16x16xf32>
    "tpu.trace_start"() <{level = 10 : i32, message = "bjl,bkl->bjk"}> : () -> ()
    %cst_16 = arith.constant dense<0.000000e+00> : vector<4x16x16xf32>
    %17 = tpu.matmul %15, %14, %cst_16 {dimension_numbers = #tpu.dot_dimension_numbers<[2], [2], [1], [1], [0, 0, 0, 1, 1, 1], [0], [0]>} : vector<4x16x32xf32>, vector<4x16x32xf32>, vector<4x16x16xf32> -> vector<4x16x16xf32>
    %cst_17 = arith.constant 0.000000e+00 : f32
    "tpu.trace_stop"() : () -> ()
    %18 = vector.broadcast %cst_17 : f32 to vector<4x16x16xf32>
    %19 = arith.cmpf ogt, %16, %18 : vector<4x16x16xf32>
    %cst_18 = arith.constant -9.000000e+15 : f32
    %20 = vector.broadcast %cst_18 : f32 to vector<4x16x16xf32>
    %21 = arith.select %19, %17, %20 : vector<4x16x16xi1>, vector<4x16x16xf32>
    %cst_19 = arith.constant dense<0xFF800000> : vector<4x16xf32>
    %22 = vector.multi_reduction <maximumf>, %21, %cst_19 [1] : vector<4x16x16xf32> to vector<4x16xf32>
    %23 = vector.shape_cast %22 : vector<4x16xf32> to vector<4x1x16xf32>
    %24 = vector.broadcast %23 : vector<4x1x16xf32> to vector<4x16x16xf32>
    %25 = arith.subf %21, %24 : vector<4x16x16xf32>
    %26 = math.exp %25 : vector<4x16x16xf32>
    %cst_20 = arith.constant dense<0.000000e+00> : vector<4x16xf32>
    %27 = vector.multi_reduction <add>, %26, %cst_20 [1] : vector<4x16x16xf32> to vector<4x16xf32>
    %28 = vector.shape_cast %27 : vector<4x16xf32> to vector<4x1x16xf32>
    %29 = tpu.reciprocal %28 : vector<4x1x16xf32> -> vector<4x1x16xf32>
    %30 = vector.broadcast %29 : vector<4x1x16xf32> to vector<4x16x16xf32>
    %31 = arith.mulf %26, %30 : vector<4x16x16xf32>
    %32 = arith.mulf %31, %16 : vector<4x16x16xf32>
    "tpu.trace_start"() <{level = 10 : i32, message = "bij,bjk->bik"}> : () -> ()
    %cst_21 = arith.constant dense<0.000000e+00> : vector<4x16x32xf32>
    %33 = tpu.matmul %32, %14, %cst_21 {dimension_numbers = #tpu.dot_dimension_numbers<[2], [1], [1], [2], [0, 0, 0, 1, 1, 2], [0], [0]>} : vector<4x16x16xf32>, vector<4x16x32xf32>, vector<4x16x32xf32> -> vector<4x16x32xf32>
    "tpu.trace_stop"() : () -> ()
    %cst_22 = arith.constant 0.000000e+00 : f32
    %34 = vector.broadcast %cst_22 : f32 to vector<4x16x32xf32>
    %35 = arith.maximumf %33, %34 : vector<4x16x32xf32>
    %36 = vector.shape_cast %35 : vector<4x16x32xf32> to vector<64x32xf32>
    %c0_23 = arith.constant 0 : index
    %c0_24 = arith.constant 0 : index
    %37 = vector.load %arg7[%c0_23, %c0_24] : memref<2x32xf32, #tpu.memory_space<vmem>>, vector<1x32xf32>
    %38 = vector.broadcast %37 : vector<1x32xf32> to vector<64x32xf32>
    %39 = arith.mulf %6, %38 : vector<64x32xf32>
    %c1_25 = arith.constant 1 : index
    %c0_26 = arith.constant 0 : index
    %40 = vector.load %arg7[%c1_25, %c0_26] : memref<2x32xf32, #tpu.memory_space<vmem>>, vector<1x32xf32>
    %41 = vector.broadcast %40 : vector<1x32xf32> to vector<64x32xf32>
    %42 = arith.mulf %36, %41 : vector<64x32xf32>
    %43 = arith.addf %39, %42 : vector<64x32xf32>
    %cst_27 = arith.constant dense<0.000000e+00> : vector<64xf32>
    %44 = vector.multi_reduction <add>, %43, %cst_27 [1] : vector<64x32xf32> to vector<64xf32>
    %45 = vector.shape_cast %44 : vector<64xf32> to vector<64x1xf32>
    %c0_28 = arith.constant 0 : index
    %46 = memref.load %arg8[%c0_28] : memref<1xf32, #tpu.memory_space<smem>>
    %47 = vector.broadcast %46 : f32 to vector<64x1xf32>
    %48 = arith.addf %45, %47 : vector<64x1xf32>
    %49 = arith.negf %48 : vector<64x1xf32>
    %50 = math.exp %49 : vector<64x1xf32>
    %cst_29 = arith.constant 1.000000e+00 : f32
    %51 = vector.broadcast %cst_29 : f32 to vector<64x1xf32>
    %52 = arith.addf %51, %50 : vector<64x1xf32>
    %53 = arith.divf %51, %52 : vector<64x1xf32>
    %54 = vector.broadcast %53 : vector<64x1xf32> to vector<64x32xf32>
    %55 = arith.mulf %54, %6 : vector<64x32xf32>
    %cst_30 = arith.constant 1.000000e+00 : f32
    %56 = vector.broadcast %cst_30 : f32 to vector<64x1xf32>
    %57 = arith.subf %56, %53 : vector<64x1xf32>
    %58 = vector.broadcast %57 : vector<64x1xf32> to vector<64x32xf32>
    %59 = arith.mulf %58, %36 : vector<64x32xf32>
    %60 = arith.addf %55, %59 : vector<64x32xf32>
    %61 = vector.shape_cast %60 : vector<64x32xf32> to vector<4x16x32xf32>
    %c0_31 = arith.constant 0 : index
    %c0_32 = arith.constant 0 : index
    %c0_33 = arith.constant 0 : index
    %62 = vector.load %arg9[%c0_31, %c0_32, %c0_33] : memref<4x16x32xf32, #tpu.memory_space<vmem>>, vector<4x16x32xf32>
    tpu.vector_store %arg9[%c0_31, %c0_32, %c0_33], %61 {strides = array<i32>} : memref<4x16x32xf32, #tpu.memory_space<vmem>>, vector<4x16x32xf32>,
    return
  }
  func.func @transform_0(%arg0: i32) -> (i32, i32, i32) {
    %c0_i32 = arith.constant 0 : i32
    %c0_i32_0 = arith.constant 0 : i32
    %c0_i32_1 = arith.constant 0 : i32
    return %arg0, %c0_i32, %c0_i32_0 : i32, i32, i32
  }
  func.func @transform_1(%arg0: i32) -> (i32, i32, i32) {
    %c0_i32 = arith.constant 0 : i32
    %c0_i32_0 = arith.constant 0 : i32
    %c0_i32_1 = arith.constant 0 : i32
    return %arg0, %c0_i32, %c0_i32_0 : i32, i32, i32
  }
  func.func @transform_2(%arg0: i32) -> (i32, i32) {
    %c0_i32 = arith.constant 0 : i32
    %c0_i32_0 = arith.constant 0 : i32
    %c0_i32_1 = arith.constant 0 : i32
    return %c0_i32, %c0_i32_0 : i32, i32
  }
  func.func @transform_3(%arg0: i32) -> (i32, i32) {
    %c0_i32 = arith.constant 0 : i32
    %c0_i32_0 = arith.constant 0 : i32
    %c0_i32_1 = arith.constant 0 : i32
    return %c0_i32, %c0_i32_0 : i32, i32
  }
  func.func @transform_4(%arg0: i32) -> (i32, i32) {
    %c0_i32 = arith.constant 0 : i32
    %c0_i32_0 = arith.constant 0 : i32
    %c0_i32_1 = arith.constant 0 : i32
    return %c0_i32, %c0_i32_0 : i32, i32
  }
  func.func @transform_5(%arg0: i32) -> (i32, i32) {
    %c0_i32 = arith.constant 0 : i32
    %c0_i32_0 = arith.constant 0 : i32
    %c0_i32_1 = arith.constant 0 : i32
    return %c0_i32, %c0_i32_0 : i32, i32
  }
  func.func @transform_6(%arg0: i32) -> (i32, i32) {
    %c0_i32 = arith.constant 0 : i32
    %c0_i32_0 = arith.constant 0 : i32
    %c0_i32_1 = arith.constant 0 : i32
    return %c0_i32, %c0_i32_0 : i32, i32
  }
  func.func @transform_7(%arg0: i32) -> i32 {
    %c0_i32 = arith.constant 0 : i32
    %c0_i32_0 = arith.constant 0 : i32
    return %c0_i32 : i32
  }
  func.func @transform_8(%arg0: i32) -> (i32, i32, i32) {
    %c0_i32 = arith.constant 0 : i32
    %c0_i32_0 = arith.constant 0 : i32
    %c0_i32_1 = arith.constant 0 : i32
    return %arg0, %c0_i32, %c0_i32_0 : i32, i32, i32
  }
}

</mosaic_0001>

<llo_original>
// kernel: tpu_custom_call.1
$region0: #{tpu_custom_call.1}
  #allocation0 [shape = 'u32[]', space=smem, size = 0x4, offset = 0x4, fixed_abs, tag = 'smem constant byte address 0x4 - core index']
  #allocation1 [shape = 'u32[144,128]{1,0:T(1,128)}', space=vmem, size = 0x12000, scoped, tag = 'internal scratch']
  #allocation2 [shape = 'f32[1]{0:T(128)S(6)}', space=smem, size = 0x200, scoped, tag = 'scoped memory for tpu_custom_call.1']
  %s0 = inlined_call_operand.hbm [shape: f32[8,16,16], index: 0, kind: input, shape index: {}]
  %s1 = inlined_call_operand.hbm [shape: f32[8,16,16], index: 1, kind: input, shape index: {}]
  %s2 = inlined_call_operand.hbm [shape: f32[16,32], index: 2, kind: input, shape index: {}]
  %s3 = inlined_call_operand.hbm [shape: f32[32,32], index: 3, kind: input, shape index: {}]
  %s4 = inlined_call_operand.vmem [shape: f32[2,32], index: 4, kind: input, shape index: {}]
  %s5 = inlined_call_operand.hbm [shape: f32[32,32], index: 5, kind: input, shape index: {}]
  %s6 = inlined_call_operand.vmem [shape: f32[2,32], index: 6, kind: input, shape index: {}]
  %s7 = inlined_call_operand.<no memory space> [shape: f32[1], index: 7, kind: input, shape index: {}]
  %s8 = inlined_call_operand.hbm [shape: f32[8,16,32], index: 8, kind: output, shape index: {}]
  %s9 = sld [smem:[#allocation0]]
  $region85: #{tpu_custom_call.1} parent=0
    _
  %s11 = ssub.s32 1, %s9
  %s12 = scalar_select 0, %s11, %s9
  %13 = sst [smem:[#allocation2]] %s7
  $region1: #{tpu_custom_call.1} parent=0
    #allocation3 [shape = 'u8[65536]{0}', space=vmem, size = 0x10000, scoped, tag = 'input window, operand 0']
    #allocation4 [shape = 's32[2]{0}', space=sflag, size = 0x8, scoped, tag = 'scoped memory for tpu_custom_call.1']
    #allocation5 [shape = 's32[2]{0}', space=sflag, size = 0x8, scoped, tag = 'scoped memory for tpu_custom_call.1']
    #allocation6 [shape = 'u8[65536]{0}', space=vmem, size = 0x10000, scoped, tag = 'input window, operand 1']
    #allocation7 [shape = 's32[2]{0}', space=sflag, size = 0x8, scoped, tag = 'scoped memory for tpu_custom_call.1']
    #allocation8 [shape = 'u8[8192]{0}', space=vmem, size = 0x2000, scoped, tag = 'input window, operand 2, single buffered']
    #allocation9 [shape = 'u8[16384]{0}', space=vmem, size = 0x4000, scoped, tag = 'input window, operand 3, single buffered']
    #allocation10 [shape = 's32[1]{0}', space=sflag, size = 0x4, scoped, tag = 'scoped memory for tpu_custom_call.1']
    #allocation11 [shape = 'u8[16384]{0}', space=vmem, size = 0x4000, scoped, tag = 'input window, operand 5, single buffered']
    #allocation12 [shape = 'u8[65536]{0}', space=vmem, size = 0x10000, scoped, tag = 'output window, operand 0']
    %14 = vsyncpa [#allocation4], 0
    %s15 = scalar_lea.sflag [#allocation4], 1
    %16 = vsyncpa %s15, 0
    %17 = vsyncpa [#allocation7], 0
    %s18 = scalar_lea.sflag [#allocation7], 1
    %19 = vsyncpa %s18, 0
    %20 = vsyncpa [#allocation10], 0
    %21 = vsyncpa [#allocation5], 0
    %s22 = scalar_lea.sflag [#allocation5], 1
    %23 = vsyncpa %s22, 0
    loop: start=0, step=1, limit=4
    $region2: #{tpu_custom_call.1} parent=1 // loop_pre_header
      _
    $region3: #{tpu_custom_call.1} parent=1 // loop_header
      %s25 = sphi 0, %s29
      %p26 = scmp.ge.s32.totalorder %s25, 4
      %s35 = sphi 0, %s37
      %s38 = sphi 0, %s35
      %s39 = sphi 0, %s38
      %s55 = sphi 0, %s39
      %s61 = sphi 0, %s63
      %s64 = sphi 0, %s61
      %s65 = sphi 0, %s64
      %s81 = sphi 0, %s65
      %s85 = sphi 0, %s85
      %s87 = sphi 0, %s85
      %s88 = sphi 0, %s87
      %s102 = sphi 0, %s88
      %s106 = sphi 0, %s106
      %s108 = sphi 0, %s106
      %s109 = sphi 0, %s108
      %s123 = sphi 0, %s109
      %s127 = sphi 0, %s127
      %s129 = sphi 0, %s127
      %s130 = sphi 0, %s129
      %s144 = sphi 0, %s130
      %s148 = sphi 0, %s148
      %s150 = sphi 0, %s148
      %s151 = sphi 0, %s150
      %s165 = sphi 0, %s151
      %s169 = sphi 0, %s169
      %s171 = sphi 0, %s169
      %s172 = sphi 0, %s171
      %s186 = sphi 0, %s172
      %s190 = sphi 0, %s190
      %s192 = sphi 0, %s190
      %s193 = sphi 0, %s192
      %s207 = sphi 0, %s193
      %s213 = sphi 0, %s215
      %s216 = sphi 0, %s213
      %s217 = sphi 0, %s216
      %s233 = sphi 0, %s217
    $region4: #{tpu_custom_call.1} parent=1 // loop_header_branch
      %28 = sbr.rel (%p26) target = $region8
    $region5: #{tpu_custom_call.1} parent=1 // loop_body
      %s30 = ssub.s32 %s25, 1
      %s31 = ssub.s32 %s25, 2
      %s32 = sadd.s32 %s25, 1
      %s33 = ssub.s32 %s25, %s32
      %p34 = scmp.eq.s32.totalorder %s33, 0
      %s36 = sadd.s32 %s35, 1
      %s37 = scalar_select %p34, %s35, %s36
      %p40 = pneg %p34
      %p41 = scmp.eq.s32.totalorder %s25, 1
      %p42 = por %p40, %p41
      %p43 = scmp.ne.s32.totalorder %s35, %s38
      %p44 = scmp.eq.s32.totalorder %s25, 0
      %p45 = por %p43, %p44
      %p46 = scmp.ne.s32.totalorder %s35, %s38
      %p47 = scmp.eq.s32.totalorder %s30, 1
      %p48 = por %p46, %p47
      %p49 = scmp.ne.s32.totalorder %s38, %s39
      %p50 = scmp.eq.s32.totalorder %s30, 0
      %p51 = por %p49, %p50
      %p52 = scmp.ne.s32.totalorder %s38, %s39
      %p53 = scmp.eq.s32.totalorder %s31, 1
      %p54 = por %p52, %p53
      %p56 = scmp.ne.s32.totalorder %s39, %s55
      %p57 = scmp.eq.s32.totalorder %s31, 0
      %p58 = por %p56, %p57
      %s59 = ssub.s32 %s25, %s32
      %p60 = scmp.eq.s32.totalorder %s59, 0
      %s62 = sadd.s32 %s61, 1
      %s63 = scalar_select %p60, %s61, %s62
      %p66 = pneg %p60
      %p67 = scmp.eq.s32.totalorder %s25, 1
      %p68 = por %p66, %p67
      %p69 = scmp.ne.s32.totalorder %s61, %s64
      %p70 = scmp.eq.s32.totalorder %s25, 0
      %p71 = por %p69, %p70
      %p72 = scmp.ne.s32.totalorder %s61, %s64
      %p73 = scmp.eq.s32.totalorder %s30, 1
      %p74 = por %p72, %p73
      %p75 = scmp.ne.s32.totalorder %s64, %s65
      %p76 = scmp.eq.s32.totalorder %s30, 0
      %p77 = por %p75, %p76
      %p78 = scmp.ne.s32.totalorder %s64, %s65
      %p79 = scmp.eq.s32.totalorder %s31, 1
      %p80 = por %p78, %p79
      %p82 = scmp.ne.s32.totalorder %s65, %s81
      %p83 = scmp.eq.s32.totalorder %s31, 0
      %p84 = por %p82, %p83
      %s86 = sadd.s32 %s85, 1
      %p89 = scmp.eq.s32.totalorder %s25, 1
      %p90 = scmp.ne.s32.totalorder %s85, %s87
      %p91 = scmp.eq.s32.totalorder %s25, 0
      %p92 = por %p90, %p91
      %p93 = scmp.ne.s32.totalorder %s85, %s87
      %p94 = scmp.eq.s32.totalorder %s30, 1
      %p95 = por %p93, %p94
      %p96 = scmp.ne.s32.totalorder %s87, %s88
      %p97 = scmp.eq.s32.totalorder %s30, 0
      %p98 = por %p96, %p97
      %p99 = scmp.ne.s32.totalorder %s87, %s88
      %p100 = scmp.eq.s32.totalorder %s31, 1
      %p101 = por %p99, %p100
      %p103 = scmp.ne.s32.totalorder %s88, %s102
      %p104 = scmp.eq.s32.totalorder %s31, 0
      %p105 = por %p103, %p104
      %s107 = sadd.s32 %s106, 1
      %p110 = scmp.eq.s32.totalorder %s25, 1
      %p111 = scmp.ne.s32.totalorder %s106, %s108
      %p112 = scmp.eq.s32.totalorder %s25, 0
      %p113 = por %p111, %p112
      %p114 = scmp.ne.s32.totalorder %s106, %s108
      %p115 = scmp.eq.s32.totalorder %s30, 1
      %p116 = por %p114, %p115
      %p117 = scmp.ne.s32.totalorder %s108, %s109
      %p118 = scmp.eq.s32.totalorder %s30, 0
      %p119 = por %p117, %p118
      %p120 = scmp.ne.s32.totalorder %s108, %s109
      %p121 = scmp.eq.s32.totalorder %s31, 1
      %p122 = por %p120, %p121
      %p124 = scmp.ne.s32.totalorder %s109, %s123
      %p125 = scmp.eq.s32.totalorder %s31, 0
      %p126 = por %p124, %p125
      %s128 = sadd.s32 %s127, 1
      %p131 = scmp.eq.s32.totalorder %s25, 1
      %p132 = scmp.ne.s32.totalorder %s127, %s129
      %p133 = scmp.eq.s32.totalorder %s25, 0
      %p134 = por %p132, %p133
      %p135 = scmp.ne.s32.totalorder %s127, %s129
      %p136 = scmp.eq.s32.totalorder %s30, 1
      %p137 = por %p135, %p136
      %p138 = scmp.ne.s32.totalorder %s129, %s130
      %p139 = scmp.eq.s32.totalorder %s30, 0
      %p140 = por %p138, %p139
      %p141 = scmp.ne.s32.totalorder %s129, %s130
      %p142 = scmp.eq.s32.totalorder %s31, 1
      %p143 = por %p141, %p142
      %p145 = scmp.ne.s32.totalorder %s130, %s144
      %p146 = scmp.eq.s32.totalorder %s31, 0
      %p147 = por %p145, %p146
      %s149 = sadd.s32 %s148, 1
      %p152 = scmp.eq.s32.totalorder %s25, 1
      %p153 = scmp.ne.s32.totalorder %s148, %s150
      %p154 = scmp.eq.s32.totalorder %s25, 0
      %p155 = por %p153, %p154
      %p156 = scmp.ne.s32.totalorder %s148, %s150
      %p157 = scmp.eq.s32.totalorder %s30, 1
      %p158 = por %p156, %p157
      %p159 = scmp.ne.s32.totalorder %s150, %s151
      %p160 = scmp.eq.s32.totalorder %s30, 0
      %p161 = por %p159, %p160
      %p162 = scmp.ne.s32.totalorder %s150, %s151
      %p163 = scmp.eq.s32.totalorder %s31, 1
      %p164 = por %p162, %p163
      %p166 = scmp.ne.s32.totalorder %s151, %s165
      %p167 = scmp.eq.s32.totalorder %s31, 0
      %p168 = por %p166, %p167
      %s170 = sadd.s32 %s169, 1
      %p173 = scmp.eq.s32.totalorder %s25, 1
      %p174 = scmp.ne.s32.totalorder %s169, %s171
      %p175 = scmp.eq.s32.totalorder %s25, 0
      %p176 = por %p174, %p175
      %p177 = scmp.ne.s32.totalorder %s169, %s171
      %p178 = scmp.eq.s32.totalorder %s30, 1
      %p179 = por %p177, %p178
      %p180 = scmp.ne.s32.totalorder %s171, %s172
      %p181 = scmp.eq.s32.totalorder %s30, 0
      %p182 = por %p180, %p181
      %p183 = scmp.ne.s32.totalorder %s171, %s172
      %p184 = scmp.eq.s32.totalorder %s31, 1
      %p185 = por %p183, %p184
      %p187 = scmp.ne.s32.totalorder %s172, %s186
      %p188 = scmp.eq.s32.totalorder %s31, 0
      %p189 = por %p187, %p188
      %s191 = sadd.s32 %s190, 1
      %p194 = scmp.eq.s32.totalorder %s25, 1
      %p195 = scmp.ne.s32.totalorder %s190, %s192
      %p196 = scmp.eq.s32.totalorder %s25, 0
      %p197 = por %p195, %p196
      %p198 = scmp.ne.s32.totalorder %s190, %s192
      %p199 = scmp.eq.s32.totalorder %s30, 1
      %p200 = por %p198, %p199
      %p201 = scmp.ne.s32.totalorder %s192, %s193
      %p202 = scmp.eq.s32.totalorder %s30, 0
      %p203 = por %p201, %p202
      %p204 = scmp.ne.s32.totalorder %s192, %s193
      %p205 = scmp.eq.s32.totalorder %s31, 1
      %p206 = por %p204, %p205
      %p208 = scmp.ne.s32.totalorder %s193, %s207
      %p209 = scmp.eq.s32.totalorder %s31, 0
      %p210 = por %p208, %p209
      %s211 = ssub.s32 %s25, %s32
      %p212 = scmp.eq.s32.totalorder %s211, 0
      %s214 = sadd.s32 %s213, 1
      %s215 = scalar_select %p212, %s213, %s214
      %p218 = pneg %p212
      %p219 = scmp.eq.s32.totalorder %s25, 1
      %p220 = por %p218, %p219
      %p221 = scmp.ne.s32.totalorder %s213, %s216
      %p222 = scmp.eq.s32.totalorder %s25, 0
      %p223 = por %p221, %p222
      %p224 = scmp.ne.s32.totalorder %s213, %s216
      %p225 = scmp.eq.s32.totalorder %s30, 1
      %p226 = por %p224, %p225
      %p227 = scmp.ne.s32.totalorder %s216, %s217
      %p228 = scmp.eq.s32.totalorder %s30, 0
      %p229 = por %p227, %p228
      %p230 = scmp.ne.s32.totalorder %s216, %s217
      %p231 = scmp.eq.s32.totalorder %s31, 1
      %p232 = por %p230, %p231
      %p234 = scmp.ne.s32.totalorder %s217, %s233
      %p235 = scmp.eq.s32.totalorder %s31, 0
      %p236 = por %p234, %p235
      %p237 = scmp.le.s32.totalorder 1, %s25
      %p238 = scmp.lt.s32.totalorder %s25, 3
      %p239 = pnand %p237, %p238
      %p240 = pneg %p239
      // Predicated region
      $region9: #{tpu_custom_call.1} parent=5 // pred_check
        _
      $region10: #{tpu_custom_call.1} parent=5 // pred_check_branch
        %242 = sbr.rel (%p239) target = $region12
      $region11: #{tpu_custom_call.1} parent=5 // pred_region
        %s243 = ssub.s32 %s25, 1
        // Predicated region
        $region13: #{tpu_custom_call.1} parent=11 // pred_check
          %p244 = pneg %p98
        $region14: #{tpu_custom_call.1} parent=11 // pred_check_branch
          %246 = sbr.rel (%p244) target = $region16
        $region15: #{tpu_custom_call.1} parent=11 // pred_region
          %s248 = ssub.s32 256, 256
          %249 = vsyncadd [#allocation7], %s248
          %s250 = sshll.u32 [#allocation8], 4
          %s251 = int_to_ptr.vmem [resolvable:$true] %s250
          %256 = dma.hbm_to_vmem [thread:$0]  %s2, 256, %s251, [#allocation7], 128, 128, 8
        $region16: #{tpu_custom_call.1} parent=11 // pred_fallthru
          _
        // Predicated region
        $region17: #{tpu_custom_call.1} parent=11 // pred_check
          %p257 = pneg %p119
        $region18: #{tpu_custom_call.1} parent=11 // pred_check_branch
          %259 = sbr.rel (%p257) target = $region20
        $region19: #{tpu_custom_call.1} parent=11 // pred_region
          %s261 = ssub.s32 512, 512
          %262 = vsyncadd [#allocation10], %s261
          %s263 = sshll.u32 [#allocation9], 4
          %s264 = int_to_ptr.vmem [resolvable:$true] %s263
          %269 = dma.hbm_to_vmem [thread:$0]  %s3, 512, %s264, [#allocation10], 128, 128, 8
        $region20: #{tpu_custom_call.1} parent=11 // pred_fallthru
          _
        // Predicated region
        $region21: #{tpu_custom_call.1} parent=11 // pred_check
          %p270 = pneg %p140
        $region22: #{tpu_custom_call.1} parent=11 // pred_check_branch
          %272 = sbr.rel (%p270) target = $region24
        $region23: #{tpu_custom_call.1} parent=11 // pred_region
          _
        $region24: #{tpu_custom_call.1} parent=11 // pred_fallthru
          _
        // Predicated region
        $region25: #{tpu_custom_call.1} parent=11 // pred_check
          %p273 = pneg %p161
        $region26: #{tpu_custom_call.1} parent=11 // pred_check_branch
          %275 = sbr.rel (%p273) target = $region28
        $region27: #{tpu_custom_call.1} parent=11 // pred_region
          %s277 = ssub.s32 512, 512
          %278 = vsyncadd [#allocation10], %s277
          %s279 = sshll.u32 [#allocation11], 4
          %s280 = int_to_ptr.vmem [resolvable:$true] %s279
          %285 = dma.hbm_to_vmem [thread:$0]  %s5, 512, %s280, [#allocation10], 128, 128, 8
        $region28: #{tpu_custom_call.1} parent=11 // pred_fallthru
          _
        // Predicated region
        $region29: #{tpu_custom_call.1} parent=11 // pred_check
          %p286 = pneg %p182
        $region30: #{tpu_custom_call.1} parent=11 // pred_check_branch
          %288 = sbr.rel (%p286) target = $region32
        $region31: #{tpu_custom_call.1} parent=11 // pred_region
          _
        $region32: #{tpu_custom_call.1} parent=11 // pred_fallthru
          _
        // Predicated region
        $region33: #{tpu_custom_call.1} parent=11 // pred_check
          %p289 = pneg %p203
        $region34: #{tpu_custom_call.1} parent=11 // pred_check_branch
          %291 = sbr.rel (%p289) target = $region36
        $region35: #{tpu_custom_call.1} parent=11 // pred_region
          _
        $region36: #{tpu_custom_call.1} parent=11 // pred_fallthru
          _
      $region12: #{tpu_custom_call.1} parent=5 // pred_fallthru
        _
      %p292 = scmp.lt.s32.totalorder %s25, 2
      // Predicated region
      $region37: #{tpu_custom_call.1} parent=5 // pred_check
        %p293 = pneg %p292
      $region38: #{tpu_custom_call.1} parent=5 // pred_check_branch
        %295 = sbr.rel (%p293) target = $region40
      $region39: #{tpu_custom_call.1} parent=5 // pred_region
        // Predicated region
        $region41: #{tpu_custom_call.1} parent=39 // pred_check
          %p296 = pneg %p45
        $region42: #{tpu_custom_call.1} parent=39 // pred_check_branch
          %298 = sbr.rel (%p296) target = $region44
        $region43: #{tpu_custom_call.1} parent=39 // pred_region
          %s299 = sand.u32 %s35, 1
          %s300 = scalar_lea.sflag [#allocation4], %s299
          %s301 = sand.u32 %s35, 1
          %s302 = smul.addr %s301, 64
          %s303 = scalar_lea.vmem [#allocation3], %s302
          %s304 = smul.u32 4, %s25
          %s306 = ssub.s32 1024, 1024
          %307 = vsyncadd %s300, %s306
          %s308 = smul.addr %s304, 2
          %s309 = smul.addr %s308, 128
          %s310 = scalar_lea.hbm %s0, %s309
          %s311 = sshll.u32 %s303, 4
          %s312 = int_to_ptr.vmem [resolvable:$true] %s311
          %317 = dma.hbm_to_vmem [thread:$0]  %s310, 1024, %s312, %s300, 128, 128, 8
        $region44: #{tpu_custom_call.1} parent=39 // pred_fallthru
          _
        // Predicated region
        $region45: #{tpu_custom_call.1} parent=39 // pred_check
          %p318 = pneg %p71
        $region46: #{tpu_custom_call.1} parent=39 // pred_check_branch
          %320 = sbr.rel (%p318) target = $region48
        $region47: #{tpu_custom_call.1} parent=39 // pred_region
          %s321 = sand.u32 %s25, 1
          %s322 = scalar_lea.sflag [#allocation7], %s321
          %s323 = sand.u32 %s61, 1
          %s324 = smul.addr %s323, 64
          %s325 = scalar_lea.vmem [#allocation6], %s324
          %s326 = smul.u32 4, %s25
          %s328 = ssub.s32 1024, 1024
          %329 = vsyncadd %s322, %s328
          %s330 = smul.addr %s326, 2
          %s331 = smul.addr %s330, 128
          %s332 = scalar_lea.hbm %s1, %s331
          %s333 = sshll.u32 %s325, 4
          %s334 = int_to_ptr.vmem [resolvable:$true] %s333
          %339 = dma.hbm_to_vmem [thread:$0]  %s332, 1024, %s334, %s322, 128, 128, 8
        $region48: #{tpu_custom_call.1} parent=39 // pred_fallthru
          _
      $region40: #{tpu_custom_call.1} parent=5 // pred_fallthru
        _
      %p340 = scmp.le.s32.totalorder 1, %s25
      %p341 = scmp.lt.s32.totalorder %s25, 3
      %p342 = pnand %p340, %p341
      %p343 = pneg %p342
      // Predicated region
      $region49: #{tpu_custom_call.1} parent=5 // pred_check
        _
      $region50: #{tpu_custom_call.1} parent=5 // pred_check_branch
        %345 = sbr.rel (%p342) target = $region52
      $region51: #{tpu_custom_call.1} parent=5 // pred_region
        %s346 = ssub.s32 %s25, 1
        %s347 = sand.u32 %s38, 1
        %s348 = scalar_lea.sflag [#allocation4], %s347
        %s349 = sand.u32 %s38, 1
        %s350 = smul.addr %s349, 64
        %s351 = scalar_lea.vmem [#allocation3], %s350
        // Predicated region
        $region53: #{tpu_custom_call.1} parent=51 // pred_check
          %p352 = pneg %p51
        $region54: #{tpu_custom_call.1} parent=51 // pred_check_branch
          %354 = sbr.rel (%p352) target = $region56
        $region55: #{tpu_custom_call.1} parent=51 // pred_region
          %355 = dma.done %s348, 1024
        $region56: #{tpu_custom_call.1} parent=51 // pred_fallthru
          _
        %s356 = sand.u32 %s30, 1
        %s357 = scalar_lea.sflag [#allocation7], %s356
        %s358 = sand.u32 %s64, 1
        %s359 = smul.addr %s358, 64
        %s360 = scalar_lea.vmem [#allocation6], %s359
        // Predicated region
        $region57: #{tpu_custom_call.1} parent=51 // pred_check
          %p361 = pneg %p77
        $region58: #{tpu_custom_call.1} parent=51 // pred_check_branch
          %363 = sbr.rel (%p361) target = $region60
        $region59: #{tpu_custom_call.1} parent=51 // pred_region
          %364 = dma.done %s357, 1024
        $region60: #{tpu_custom_call.1} parent=51 // pred_fallthru
          _
        // Predicated region
        $region61: #{tpu_custom_call.1} parent=51 // pred_check
          %p365 = pneg %p98
        $region62: #{tpu_custom_call.1} parent=51 // pred_check_branch
          %367 = sbr.rel (%p365) target = $region64
        $region63: #{tpu_custom_call.1} parent=51 // pred_region
          %368 = dma.done [#allocation7], 256
        $region64: #{tpu_custom_call.1} parent=51 // pred_fallthru
          _
        // Predicated region
        $region65: #{tpu_custom_call.1} parent=51 // pred_check
          %p369 = pneg %p119
        $region66: #{tpu_custom_call.1} parent=51 // pred_check_branch
          %371 = sbr.rel (%p369) target = $region68
        $region67: #{tpu_custom_call.1} parent=51 // pred_region
          %372 = dma.done [#allocation10], 512
        $region68: #{tpu_custom_call.1} parent=51 // pred_fallthru
          _
        // Predicated region
        $region69: #{tpu_custom_call.1} parent=51 // pred_check
          %p373 = pneg %p161
        $region70: #{tpu_custom_call.1} parent=51 // pred_check_branch
          %375 = sbr.rel (%p373) target = $region72
        $region71: #{tpu_custom_call.1} parent=51 // pred_region
          %376 = dma.done [#allocation10], 512
        $region72: #{tpu_custom_call.1} parent=51 // pred_fallthru
          _
        %s377 = sand.u32 %s38, 1
        %s378 = scalar_lea.sflag [#allocation4], %s377
        %s379 = sand.u32 %s38, 1
        %s380 = smul.addr %s379, 64
        %s381 = scalar_lea.vmem [#allocation3], %s380
        %p382 = pneg %p51
        %p383 = pneg %p48
        %s384 = sand.u32 %s30, 1
        %s385 = scalar_lea.sflag [#allocation7], %s384
        %s386 = sand.u32 %s64, 1
        %s387 = smul.addr %s386, 64
        %s388 = scalar_lea.vmem [#allocation6], %s387
        %p389 = pneg %p77
        %p390 = pneg %p74
        %p391 = pneg %p98
        %p392 = pneg %p95
        %p393 = pneg %p119
        %p394 = pneg %p116
        %p395 = pneg %p140
        %p396 = pneg %p137
        %p397 = pneg %p161
        %p398 = pneg %p158
        %p399 = pneg %p182
        %p400 = pneg %p179
        %p401 = pneg %p203
        %p402 = pneg %p200
        %p403 = pneg %p229
        %p404 = pneg %p226
        %s405 = sand.u32 %s216, 1
        %s406 = scalar_lea.sflag [#allocation5], %s405
        %s407 = sand.u32 %s216, 1
        %s408 = smul.addr %s407, 64
        %s409 = scalar_lea.vmem [#allocation12], %s408
        %s410 = smul.u32 4, %s30
        %s411 = smul.u32 4, %s30
        %s412 = smul.u32 4, %s30
        %v413 = vld [vmem:[%s351] sm:$0xff]
        %v414 = vld [vmem:[%s351 + $0x8] sm:$0xff]
        %v415 = vld [vmem:[%s351 + $0x10] sm:$0xff]
        %v416 = vld [vmem:[%s351 + $0x18] sm:$0xff]
        %v417 = vld [vmem:[%s351 + $0x20] sm:$0xff]
        %v418 = vld [vmem:[%s351 + $0x28] sm:$0xff]
        %v419 = vld [vmem:[%s351 + $0x30] sm:$0xff]
        %v420 = vld [vmem:[%s351 + $0x38] sm:$0xff]
        %v421 = vld [vmem:[#allocation8] sm:$0xff]
        %v422 = vld [vmem:[#allocation8 + $0x8] sm:$0xff]
        %v423 = vld [vmem:[%s4] sm:$0x1]
        %v424 = vlaneseq
        %v425 = vshrl.u32 %v424, 7
        %v426 = vsub.s32 0, %v425
        %v427 = vrot.slane %v423, %v426
        %vm428 = vcmask 130048
        %v430 = vsel %vm428, %v413, 0
        %v433 = vsel %vm428, %v414, 0
        %v436 = vsel %vm428, %v415, 0
        %v439 = vsel %vm428, %v416, 0
        %v442 = vsel %vm428, %v417, 0
        %v445 = vsel %vm428, %v418, 0
        %v448 = vsel %vm428, %v419, 0
        %v451 = vsel %vm428, %v420, 0
        %453 = vmatprep.subr.mxu0 0.0
        %454 = vmatpush1.msra.mxu0 0.0
        %455 = vmatprep.subr.mxu0 0.0
        %456 = vmatpush1.msra.mxu0 0.0
        %457 = vmatprep.subr.mxu0 0.0
        %458 = vmatpush1.msra.mxu0 0.0
        %459 = vmatprep.subr.mxu0 0.0
        %460 = vmatpush1.msra.mxu0 0.0
        %461 = vmatprep.subr.mxu0 0.0
        %462 = vmatpush1.msra.mxu0 0.0
        %463 = vmatprep.subr.mxu0 0.0
        %464 = vmatpush1.msra.mxu0 0.0
        %465 = vmatprep.subr.mxu0 0.0
        %466 = vmatpush1.msra.mxu0 0.0
        %467 = vmatprep.subr.mxu0 0.0
        %468 = vmatpush1.msra.mxu0 0.0
        %469 = vmatprep.subr.mxu0 0.0
        %470 = vmatpush1.msra.mxu0 0.0
        %471 = vmatprep.subr.mxu0 0.0
        %472 = vmatpush1.msra.mxu0 0.0
        %473 = vmatprep.subr.mxu0 0.0
        %474 = vmatpush1.msra.mxu0 0.0
        %475 = vmatprep.subr.mxu0 0.0
        %476 = vmatpush1.msra.mxu0 0.0
        %477 = vmatprep.subr.mxu0 0.0
        %478 = vmatpush1.msra.mxu0 0.0
        %479 = vmatprep.subr.mxu0 0.0
        %480 = vmatpush1.msra.mxu0 0.0
        %481 = vmatprep.subr.mxu0 0.0
        %482 = vmatpush1.msra.mxu0 %v422
        %483 = vmatprep.subr.mxu0 0.0
        %484 = vmatpush1.msra.mxu0 %v421
        %485 = vmatprep.subr.mxu0 0.0
        %486 = vmatpush2.msra.mxu0 0.0
        %487 = vmatprep.subr.mxu0 0.0
        %488 = vmatpush2.msra.mxu0 0.0
        %489 = vmatprep.subr.mxu0 0.0
        %490 = vmatpush2.msra.mxu0 0.0
        %491 = vmatprep.subr.mxu0 0.0
        %492 = vmatpush2.msra.mxu0 0.0
        %493 = vmatprep.subr.mxu0 0.0
        %494 = vmatpush2.msra.mxu0 0.0
        %495 = vmatprep.subr.mxu0 0.0
        %496 = vmatpush2.msra.mxu0 0.0
        %497 = vmatprep.subr.mxu0 0.0
        %498 = vmatpush2.msra.mxu0 0.0
        %499 = vmatprep.subr.mxu0 0.0
        %500 = vmatpush2.msra.mxu0 0.0
        %501 = vmatprep.subr.mxu0 0.0
        %502 = vmatpush2.msra.mxu0 0.0
        %503 = vmatprep.subr.mxu0 0.0
        %504 = vmatpush2.msra.mxu0 0.0
        %505 = vmatprep.subr.mxu0 0.0
        %506 = vmatpush2.msra.mxu0 0.0
        %507 = vmatprep.subr.mxu0 0.0
        %508 = vmatpush2.msra.mxu0 0.0
        %509 = vmatprep.subr.mxu0 0.0
        %510 = vmatpush2.msra.mxu0 0.0
        %511 = vmatprep.subr.mxu0 0.0
        %512 = vmatpush2.msra.mxu0 0.0
        %513 = vmatprep.subr.mxu0 0.0
        %514 = vmatpush2.msra.mxu0 0.0
        %515 = vmatprep.subr.mxu0 0.0
        %516 = vmatpush2.msra.mxu0 0.0
        %517 = vmatprep.mubr.f32.mxu0 0.0
        %518 = vmatmul.mubr.f32.gmra.mxu0 %v430
        %v519 = vpop.f32.mrf.mxu0
        %v520 = vadd.f32 %v427, %v519
        %v521 = vpop.f32.mrf.mxu0
        %522 = vmatprep.mubr.f32.mxu0 0.0
        %523 = vmatmul.mubr.f32.gmra.mxu0 %v433
        %v524 = vpop.f32.mrf.mxu0
        %v525 = vadd.f32 %v427, %v524
        %v526 = vpop.f32.mrf.mxu0
        %527 = vmatprep.mubr.f32.mxu0 0.0
        %528 = vmatmul.mubr.f32.gmra.mxu0 %v436
        %v529 = vpop.f32.mrf.mxu0
        %v530 = vadd.f32 %v427, %v529
        %v531 = vpop.f32.mrf.mxu0
        %532 = vmatprep.mubr.f32.mxu0 0.0
        %533 = vmatmul.mubr.f32.gmra.mxu0 %v439
        %v534 = vpop.f32.mrf.mxu0
        %v535 = vadd.f32 %v427, %v534
        %v536 = vpop.f32.mrf.mxu0
        %537 = vmatprep.mubr.f32.mxu0 0.0
        %538 = vmatmul.mubr.f32.gmra.mxu0 %v442
        %v539 = vpop.f32.mrf.mxu0
        %v540 = vadd.f32 %v427, %v539
        %v541 = vpop.f32.mrf.mxu0
        %542 = vmatprep.mubr.f32.mxu0 0.0
        %543 = vmatmul.mubr.f32.gmra.mxu0 %v445
        %v544 = vpop.f32.mrf.mxu0
        %v545 = vadd.f32 %v427, %v544
        %v546 = vpop.f32.mrf.mxu0
        %547 = vmatprep.mubr.f32.mxu0 0.0
        %548 = vmatmul.mubr.f32.gmra.mxu0 %v448
        %v549 = vpop.f32.mrf.mxu0
        %v550 = vadd.f32 %v427, %v549
        %v551 = vpop.f32.mrf.mxu0
        %552 = vmatprep.mubr.f32.mxu0 0.0
        %553 = vmatmul.mubr.f32.gmra.mxu0 %v451
        %v554 = vpop.f32.mrf.mxu0
        %v555 = vadd.f32 %v427, %v554
        %v556 = vpop.f32.mrf.mxu0
        %557 = vdwg.mxu0
        %v558 = vld [vmem:[%s4 + $0x1] sm:$0x1]
        %v559 = vld [vmem:[#allocation9] sm:$0xff]
        %v560 = vld [vmem:[#allocation9 + $0x8] sm:$0xff]
        %v561 = vld [vmem:[#allocation9 + $0x10] sm:$0xff]
        %v562 = vld [vmem:[#allocation9 + $0x18] sm:$0xff]
        %v563 = vlaneseq
        %v564 = vshrl.u32 %v563, 7
        %v565 = vsub.s32 0, %v564
        %v566 = vrot.slane %v558, %v565
        %vm567 = vcmask 261120
        %v569 = vsel %vm567, %v520, 0
        %v572 = vsel %vm567, %v525, 0
        %v575 = vsel %vm567, %v530, 0
        %v578 = vsel %vm567, %v535, 0
        %v581 = vsel %vm567, %v540, 0
        %v584 = vsel %vm567, %v545, 0
        %v587 = vsel %vm567, %v550, 0
        %v590 = vsel %vm567, %v555, 0
        %592 = vmatprep.subr.mxu0 0.0
        %593 = vmatpush1.msra.mxu0 0.0
        %594 = vmatprep.subr.mxu0 0.0
        %595 = vmatpush1.msra.mxu0 0.0
        %596 = vmatprep.subr.mxu0 0.0
        %597 = vmatpush1.msra.mxu0 0.0
        %598 = vmatprep.subr.mxu0 0.0
        %599 = vmatpush1.msra.mxu0 0.0
        %600 = vmatprep.subr.mxu0 0.0
        %601 = vmatpush1.msra.mxu0 0.0
        %602 = vmatprep.subr.mxu0 0.0
        %603 = vmatpush1.msra.mxu0 0.0
        %604 = vmatprep.subr.mxu0 0.0
        %605 = vmatpush1.msra.mxu0 0.0
        %606 = vmatprep.subr.mxu0 0.0
        %607 = vmatpush1.msra.mxu0 0.0
        %608 = vmatprep.subr.mxu0 0.0
        %609 = vmatpush1.msra.mxu0 0.0
        %610 = vmatprep.subr.mxu0 0.0
        %611 = vmatpush1.msra.mxu0 0.0
        %612 = vmatprep.subr.mxu0 0.0
        %613 = vmatpush1.msra.mxu0 0.0
        %614 = vmatprep.subr.mxu0 0.0
        %615 = vmatpush1.msra.mxu0 0.0
        %616 = vmatprep.subr.mxu0 0.0
        %617 = vmatpush1.msra.mxu0 %v562
        %618 = vmatprep.subr.mxu0 0.0
        %619 = vmatpush1.msra.mxu0 %v561
        %620 = vmatprep.subr.mxu0 0.0
        %621 = vmatpush1.msra.mxu0 %v560
        %622 = vmatprep.subr.mxu0 0.0
        %623 = vmatpush1.msra.mxu0 %v559
        %624 = vmatprep.subr.mxu0 0.0
        %625 = vmatpush2.msra.mxu0 0.0
        %626 = vmatprep.subr.mxu0 0.0
        %627 = vmatpush2.msra.mxu0 0.0
        %628 = vmatprep.subr.mxu0 0.0
        %629 = vmatpush2.msra.mxu0 0.0
        %630 = vmatprep.subr.mxu0 0.0
        %631 = vmatpush2.msra.mxu0 0.0
        %632 = vmatprep.subr.mxu0 0.0
        %633 = vmatpush2.msra.mxu0 0.0
        %634 = vmatprep.subr.mxu0 0.0
        %635 = vmatpush2.msra.mxu0 0.0
        %636 = vmatprep.subr.mxu0 0.0
        %637 = vmatpush2.msra.mxu0 0.0
        %638 = vmatprep.subr.mxu0 0.0
        %639 = vmatpush2.msra.mxu0 0.0
        %640 = vmatprep.subr.mxu0 0.0
        %641 = vmatpush2.msra.mxu0 0.0
        %642 = vmatprep.subr.mxu0 0.0
        %643 = vmatpush2.msra.mxu0 0.0
        %644 = vmatprep.subr.mxu0 0.0
        %645 = vmatpush2.msra.mxu0 0.0
        %646 = vmatprep.subr.mxu0 0.0
        %647 = vmatpush2.msra.mxu0 0.0
        %648 = vmatprep.subr.mxu0 0.0
        %649 = vmatpush2.msra.mxu0 0.0
        %650 = vmatprep.subr.mxu0 0.0
        %651 = vmatpush2.msra.mxu0 0.0
        %652 = vmatprep.subr.mxu0 0.0
        %653 = vmatpush2.msra.mxu0 0.0
        %654 = vmatprep.subr.mxu0 0.0
        %655 = vmatpush2.msra.mxu0 0.0
        %656 = vmatprep.mubr.f32.mxu0 0.0
        %657 = vmatmul.mubr.f32.gmra.mxu0 %v569
        %v658 = vpop.f32.mrf.mxu0
        %v659 = vadd.f32 %v566, %v658
        %v660 = vpop.f32.mrf.mxu0
        %661 = vmatprep.mubr.f32.mxu0 0.0
        %662 = vmatmul.mubr.f32.gmra.mxu0 %v572
        %v663 = vpop.f32.mrf.mxu0
        %v664 = vadd.f32 %v566, %v663
        %v665 = vpop.f32.mrf.mxu0
        %666 = vmatprep.mubr.f32.mxu0 0.0
        %667 = vmatmul.mubr.f32.gmra.mxu0 %v575
        %v668 = vpop.f32.mrf.mxu0
        %v669 = vadd.f32 %v566, %v668
        %v670 = vpop.f32.mrf.mxu0
        %671 = vmatprep.mubr.f32.mxu0 0.0
        %672 = vmatmul.mubr.f32.gmra.mxu0 %v578
        %v673 = vpop.f32.mrf.mxu0
        %v674 = vadd.f32 %v566, %v673
        %v675 = vpop.f32.mrf.mxu0
        %676 = vmatprep.mubr.f32.mxu0 0.0
        %677 = vmatmul.mubr.f32.gmra.mxu0 %v581
        %v678 = vpop.f32.mrf.mxu0
        %v679 = vadd.f32 %v566, %v678
        %v680 = vpop.f32.mrf.mxu0
        %681 = vmatprep.mubr.f32.mxu0 0.0
        %682 = vmatmul.mubr.f32.gmra.mxu0 %v584
        %v683 = vpop.f32.mrf.mxu0
        %v684 = vadd.f32 %v566, %v683
        %v685 = vpop.f32.mrf.mxu0
        %686 = vmatprep.mubr.f32.mxu0 0.0
        %687 = vmatmul.mubr.f32.gmra.mxu0 %v587
        %v688 = vpop.f32.mrf.mxu0
        %v689 = vadd.f32 %v566, %v688
        %v690 = vpop.f32.mrf.mxu0
        %691 = vmatprep.mubr.f32.mxu0 0.0
        %692 = vmatmul.mubr.f32.gmra.mxu0 %v590
        %v693 = vpop.f32.mrf.mxu0
        %v694 = vadd.f32 %v566, %v693
        %v695 = vpop.f32.mrf.mxu0
        %696 = vdwg.mxu0
        %v697 = vld [vmem:[#allocation11] sm:$0xff]
        %v698 = vld [vmem:[#allocation11 + $0x8] sm:$0xff]
        %v699 = vld [vmem:[#allocation11 + $0x10] sm:$0xff]
        %v700 = vld [vmem:[#allocation11 + $0x18] sm:$0xff]
        %v702 = vsel %vm567, %v659, 0
        %v705 = vsel %vm567, %v664, 0
        %v708 = vsel %vm567, %v669, 0
        %v711 = vsel %vm567, %v674, 0
        %v714 = vsel %vm567, %v679, 0
        %v717 = vsel %vm567, %v684, 0
        %v720 = vsel %vm567, %v689, 0
        %v723 = vsel %vm567, %v694, 0
        %725 = vmatprep.subr.mxu0 0.0
        %726 = vmatpush1.msra.mxu0 0.0
        %727 = vmatprep.subr.mxu0 0.0
        %728 = vmatpush1.msra.mxu0 0.0
        %729 = vmatprep.subr.mxu0 0.0
        %730 = vmatpush1.msra.mxu0 0.0
        %731 = vmatprep.subr.mxu0 0.0
        %732 = vmatpush1.msra.mxu0 0.0
        %733 = vmatprep.subr.mxu0 0.0
        %734 = vmatpush1.msra.mxu0 0.0
        %735 = vmatprep.subr.mxu0 0.0
        %736 = vmatpush1.msra.mxu0 0.0
        %737 = vmatprep.subr.mxu0 0.0
        %738 = vmatpush1.msra.mxu0 0.0
        %739 = vmatprep.subr.mxu0 0.0
        %740 = vmatpush1.msra.mxu0 0.0
        %741 = vmatprep.subr.mxu0 0.0
        %742 = vmatpush1.msra.mxu0 0.0
        %743 = vmatprep.subr.mxu0 0.0
        %744 = vmatpush1.msra.mxu0 0.0
        %745 = vmatprep.subr.mxu0 0.0
        %746 = vmatpush1.msra.mxu0 0.0
        %747 = vmatprep.subr.mxu0 0.0
        %748 = vmatpush1.msra.mxu0 0.0
        %749 = vmatprep.subr.mxu0 0.0
        %750 = vmatpush1.msra.mxu0 %v700
        %751 = vmatprep.subr.mxu0 0.0
        %752 = vmatpush1.msra.mxu0 %v699
        %753 = vmatprep.subr.mxu0 0.0
        %754 = vmatpush1.msra.mxu0 %v698
        %755 = vmatprep.subr.mxu0 0.0
        %756 = vmatpush1.msra.mxu0 %v697
        %757 = vmatprep.subr.mxu0 0.0
        %758 = vmatpush2.msra.mxu0 0.0
        %759 = vmatprep.subr.mxu0 0.0
        %760 = vmatpush2.msra.mxu0 0.0
        %761 = vmatprep.subr.mxu0 0.0
        %762 = vmatpush2.msra.mxu0 0.0
        %763 = vmatprep.subr.mxu0 0.0
        %764 = vmatpush2.msra.mxu0 0.0
        %765 = vmatprep.subr.mxu0 0.0
        %766 = vmatpush2.msra.mxu0 0.0
        %767 = vmatprep.subr.mxu0 0.0
        %768 = vmatpush2.msra.mxu0 0.0
        %769 = vmatprep.subr.mxu0 0.0
        %770 = vmatpush2.msra.mxu0 0.0
        %771 = vmatprep.subr.mxu0 0.0
        %772 = vmatpush2.msra.mxu0 0.0
        %773 = vmatprep.subr.mxu0 0.0
        %774 = vmatpush2.msra.mxu0 0.0
        %775 = vmatprep.subr.mxu0 0.0
        %776 = vmatpush2.msra.mxu0 0.0
        %777 = vmatprep.subr.mxu0 0.0
        %778 = vmatpush2.msra.mxu0 0.0
        %779 = vmatprep.subr.mxu0 0.0
        %780 = vmatpush2.msra.mxu0 0.0
        %781 = vmatprep.subr.mxu0 0.0
        %782 = vmatpush2.msra.mxu0 0.0
        %783 = vmatprep.subr.mxu0 0.0
        %784 = vmatpush2.msra.mxu0 0.0
        %785 = vmatprep.subr.mxu0 0.0
        %786 = vmatpush2.msra.mxu0 0.0
        %787 = vmatprep.subr.mxu0 0.0
        %788 = vmatpush2.msra.mxu0 0.0
        %789 = vmatprep.mubr.f32.mxu0 0.0
        %790 = vmatmul.mubr.f32.gmra.mxu0 %v702
        %v791 = vpop.f32.mrf.mxu0
        %v792 = vadd.f32 0.0, %v791
        %v793 = vpop.f32.mrf.mxu0
        %794 = vmatprep.mubr.f32.mxu0 0.0
        %795 = vmatmul.mubr.f32.gmra.mxu0 %v705
        %v796 = vpop.f32.mrf.mxu0
        %v797 = vadd.f32 0.0, %v796
        %v798 = vpop.f32.mrf.mxu0
        %799 = vmatprep.mubr.f32.mxu0 0.0
        %800 = vmatmul.mubr.f32.gmra.mxu0 %v708
        %v801 = vpop.f32.mrf.mxu0
        %v802 = vadd.f32 0.0, %v801
        %v803 = vpop.f32.mrf.mxu0
        %804 = vmatprep.mubr.f32.mxu0 0.0
        %805 = vmatmul.mubr.f32.gmra.mxu0 %v711
        %v806 = vpop.f32.mrf.mxu0
        %v807 = vadd.f32 0.0, %v806
        %v808 = vpop.f32.mrf.mxu0
        %809 = vmatprep.mubr.f32.mxu0 0.0
        %810 = vmatmul.mubr.f32.gmra.mxu0 %v714
        %v811 = vpop.f32.mrf.mxu0
        %v812 = vadd.f32 0.0, %v811
        %v813 = vpop.f32.mrf.mxu0
        %814 = vmatprep.mubr.f32.mxu0 0.0
        %815 = vmatmul.mubr.f32.gmra.mxu0 %v717
        %v816 = vpop.f32.mrf.mxu0
        %v817 = vadd.f32 0.0, %v816
        %v818 = vpop.f32.mrf.mxu0
        %819 = vmatprep.mubr.f32.mxu0 0.0
        %820 = vmatmul.mubr.f32.gmra.mxu0 %v720
        %v821 = vpop.f32.mrf.mxu0
        %v822 = vadd.f32 0.0, %v821
        %v823 = vpop.f32.mrf.mxu0
        %824 = vmatprep.mubr.f32.mxu0 0.0
        %825 = vmatmul.mubr.f32.gmra.mxu0 %v723
        %v826 = vpop.f32.mrf.mxu0
        %v827 = vadd.f32 0.0, %v826
        %v828 = vpop.f32.mrf.mxu0
        %829 = vdwg.mxu0
        %v830 = vld [vmem:[%s360] sm:$0xff]
        %v831 = vld [vmem:[%s360 + $0x8] sm:$0xff]
        %v832 = vld [vmem:[%s360 + $0x10] sm:$0xff]
        %v833 = vld [vmem:[%s360 + $0x18] sm:$0xff]
        %v834 = vld [vmem:[%s360 + $0x20] sm:$0xff]
        %v835 = vld [vmem:[%s360 + $0x28] sm:$0xff]
        %v836 = vld [vmem:[%s360 + $0x30] sm:$0xff]
        %v837 = vld [vmem:[%s360 + $0x38] sm:$0xff]
        %v839 = vsel %vm567, %v792, 0
        %v842 = vsel %vm567, %v797, 0
        %844 = vmatprep.subr.mxu0 0.0
        %845 = vmatpush1.xpose.msra.mxu0 0.0
        %846 = vmatprep.subr.mxu0 0.0
        %847 = vmatpush1.xpose.msra.mxu0 0.0
        %848 = vmatprep.subr.mxu0 0.0
        %849 = vmatpush1.xpose.msra.mxu0 0.0
        %850 = vmatprep.subr.mxu0 0.0
        %851 = vmatpush1.xpose.msra.mxu0 0.0
        %852 = vmatprep.subr.mxu0 0.0
        %853 = vmatpush1.xpose.msra.mxu0 0.0
        %854 = vmatprep.subr.mxu0 0.0
        %855 = vmatpush1.xpose.msra.mxu0 0.0
        %856 = vmatprep.subr.mxu0 0.0
        %857 = vmatpush1.xpose.msra.mxu0 0.0
        %858 = vmatprep.subr.mxu0 0.0
        %859 = vmatpush1.xpose.msra.mxu0 0.0
        %860 = vmatprep.subr.mxu0 0.0
        %861 = vmatpush1.xpose.msra.mxu0 0.0
        %862 = vmatprep.subr.mxu0 0.0
        %863 = vmatpush1.xpose.msra.mxu0 0.0
        %864 = vmatprep.subr.mxu0 0.0
        %865 = vmatpush1.xpose.msra.mxu0 0.0
        %866 = vmatprep.subr.mxu0 0.0
        %867 = vmatpush1.xpose.msra.mxu0 0.0
        %868 = vmatprep.subr.mxu0 0.0
        %869 = vmatpush1.xpose.msra.mxu0 0.0
        %870 = vmatprep.subr.mxu0 0.0
        %871 = vmatpush1.xpose.msra.mxu0 0.0
        %872 = vmatprep.subr.mxu0 0.0
        %873 = vmatpush1.xpose.msra.mxu0 %v705
        %874 = vmatprep.subr.mxu0 0.0
        %875 = vmatpush1.xpose.msra.mxu0 %v702
        %876 = vmatprep.subr.mxu0 0.0
        %877 = vmatpush2.xpose.msra.mxu0 0.0
        %878 = vmatprep.subr.mxu0 0.0
        %879 = vmatpush2.xpose.msra.mxu0 0.0
        %880 = vmatprep.subr.mxu0 0.0
        %881 = vmatpush2.xpose.msra.mxu0 0.0
        %882 = vmatprep.subr.mxu0 0.0
        %883 = vmatpush2.xpose.msra.mxu0 0.0
        %884 = vmatprep.subr.mxu0 0.0
        %885 = vmatpush2.xpose.msra.mxu0 0.0
        %886 = vmatprep.subr.mxu0 0.0
        %887 = vmatpush2.xpose.msra.mxu0 0.0
        %888 = vmatprep.subr.mxu0 0.0
        %889 = vmatpush2.xpose.msra.mxu0 0.0
        %890 = vmatprep.subr.mxu0 0.0
        %891 = vmatpush2.xpose.msra.mxu0 0.0
        %892 = vmatprep.subr.mxu0 0.0
        %893 = vmatpush2.xpose.msra.mxu0 0.0
        %894 = vmatprep.subr.mxu0 0.0
        %895 = vmatpush2.xpose.msra.mxu0 0.0
        %896 = vmatprep.subr.mxu0 0.0
        %897 = vmatpush2.xpose.msra.mxu0 0.0
        %898 = vmatprep.subr.mxu0 0.0
        %899 = vmatpush2.xpose.msra.mxu0 0.0
        %900 = vmatprep.subr.mxu0 0.0
        %901 = vmatpush2.xpose.msra.mxu0 0.0
        %902 = vmatprep.subr.mxu0 0.0
        %903 = vmatpush2.xpose.msra.mxu0 0.0
        %904 = vmatprep.subr.mxu0 0.0
        %905 = vmatpush2.xpose.msra.mxu0 0.0
        %906 = vmatprep.subr.mxu0 0.0
        %907 = vmatpush2.xpose.msra.mxu0 0.0
        %908 = vmatprep.mubr.f32.mxu0 0.0
        %909 = vmatmul.mubr.f32.gmra.mxu0 %v839
        %v910 = vpop.f32.mrf.mxu0
        %v911 = vadd.f32 0.0, %v910
        %v912 = vpop.f32.mrf.mxu0
        %913 = vmatprep.mubr.f32.mxu0 0.0
        %914 = vmatmul.mubr.f32.gmra.mxu0 %v842
        %v915 = vpop.f32.mrf.mxu0
        %v916 = vadd.f32 0.0, %v915
        %v917 = vpop.f32.mrf.mxu0
        %918 = vdwg.mxu0
        %v920 = vsel %vm567, %v802, 0
        %v923 = vsel %vm567, %v807, 0
        %925 = vmatprep.subr.mxu0 0.0
        %926 = vmatpush1.xpose.msra.mxu0 0.0
        %927 = vmatprep.subr.mxu0 0.0
        %928 = vmatpush1.xpose.msra.mxu0 0.0
        %929 = vmatprep.subr.mxu0 0.0
        %930 = vmatpush1.xpose.msra.mxu0 0.0
        %931 = vmatprep.subr.mxu0 0.0
        %932 = vmatpush1.xpose.msra.mxu0 0.0
        %933 = vmatprep.subr.mxu0 0.0
        %934 = vmatpush1.xpose.msra.mxu0 0.0
        %935 = vmatprep.subr.mxu0 0.0
        %936 = vmatpush1.xpose.msra.mxu0 0.0
        %937 = vmatprep.subr.mxu0 0.0
        %938 = vmatpush1.xpose.msra.mxu0 0.0
        %939 = vmatprep.subr.mxu0 0.0
        %940 = vmatpush1.xpose.msra.mxu0 0.0
        %941 = vmatprep.subr.mxu0 0.0
        %942 = vmatpush1.xpose.msra.mxu0 0.0
        %943 = vmatprep.subr.mxu0 0.0
        %944 = vmatpush1.xpose.msra.mxu0 0.0
        %945 = vmatprep.subr.mxu0 0.0
        %946 = vmatpush1.xpose.msra.mxu0 0.0
        %947 = vmatprep.subr.mxu0 0.0
        %948 = vmatpush1.xpose.msra.mxu0 0.0
        %949 = vmatprep.subr.mxu0 0.0
        %950 = vmatpush1.xpose.msra.mxu0 0.0
        %951 = vmatprep.subr.mxu0 0.0
        %952 = vmatpush1.xpose.msra.mxu0 0.0
        %953 = vmatprep.subr.mxu0 0.0
        %954 = vmatpush1.xpose.msra.mxu0 %v711
        %955 = vmatprep.subr.mxu0 0.0
        %956 = vmatpush1.xpose.msra.mxu0 %v708
        %957 = vmatprep.subr.mxu0 0.0
        %958 = vmatpush2.xpose.msra.mxu0 0.0
        %959 = vmatprep.subr.mxu0 0.0
        %960 = vmatpush2.xpose.msra.mxu0 0.0
        %961 = vmatprep.subr.mxu0 0.0
        %962 = vmatpush2.xpose.msra.mxu0 0.0
        %963 = vmatprep.subr.mxu0 0.0
        %964 = vmatpush2.xpose.msra.mxu0 0.0
        %965 = vmatprep.subr.mxu0 0.0
        %966 = vmatpush2.xpose.msra.mxu0 0.0
        %967 = vmatprep.subr.mxu0 0.0
        %968 = vmatpush2.xpose.msra.mxu0 0.0
        %969 = vmatprep.subr.mxu0 0.0
        %970 = vmatpush2.xpose.msra.mxu0 0.0
        %971 = vmatprep.subr.mxu0 0.0
        %972 = vmatpush2.xpose.msra.mxu0 0.0
        %973 = vmatprep.subr.mxu0 0.0
        %974 = vmatpush2.xpose.msra.mxu0 0.0
        %975 = vmatprep.subr.mxu0 0.0
        %976 = vmatpush2.xpose.msra.mxu0 0.0
        %977 = vmatprep.subr.mxu0 0.0
        %978 = vmatpush2.xpose.msra.mxu0 0.0
        %979 = vmatprep.subr.mxu0 0.0
        %980 = vmatpush2.xpose.msra.mxu0 0.0
        %981 = vmatprep.subr.mxu0 0.0
        %982 = vmatpush2.xpose.msra.mxu0 0.0
        %983 = vmatprep.subr.mxu0 0.0
        %984 = vmatpush2.xpose.msra.mxu0 0.0
        %985 = vmatprep.subr.mxu0 0.0
        %986 = vmatpush2.xpose.msra.mxu0 0.0
        %987 = vmatprep.subr.mxu0 0.0
        %988 = vmatpush2.xpose.msra.mxu0 0.0
        %989 = vmatprep.mubr.f32.mxu0 0.0
        %990 = vmatmul.mubr.f32.gmra.mxu0 %v920
        %v991 = vpop.f32.mrf.mxu0
        %v992 = vadd.f32 0.0, %v991
        %v993 = vpop.f32.mrf.mxu0
        %994 = vmatprep.mubr.f32.mxu0 0.0
        %995 = vmatmul.mubr.f32.gmra.mxu0 %v923
        %v996 = vpop.f32.mrf.mxu0
        %v997 = vadd.f32 0.0, %v996
        %v998 = vpop.f32.mrf.mxu0
        %999 = vdwg.mxu0
        %v1001 = vsel %vm567, %v812, 0
        %v1004 = vsel %vm567, %v817, 0
        %1006 = vmatprep.subr.mxu0 0.0
        %1007 = vmatpush1.xpose.msra.mxu0 0.0
        %1008 = vmatprep.subr.mxu0 0.0
        %1009 = vmatpush1.xpose.msra.mxu0 0.0
        %1010 = vmatprep.subr.mxu0 0.0
        %1011 = vmatpush1.xpose.msra.mxu0 0.0
        %1012 = vmatprep.subr.mxu0 0.0
        %1013 = vmatpush1.xpose.msra.mxu0 0.0
        %1014 = vmatprep.subr.mxu0 0.0
        %1015 = vmatpush1.xpose.msra.mxu0 0.0
        %1016 = vmatprep.subr.mxu0 0.0
        %1017 = vmatpush1.xpose.msra.mxu0 0.0
        %1018 = vmatprep.subr.mxu0 0.0
        %1019 = vmatpush1.xpose.msra.mxu0 0.0
        %1020 = vmatprep.subr.mxu0 0.0
        %1021 = vmatpush1.xpose.msra.mxu0 0.0
        %1022 = vmatprep.subr.mxu0 0.0
        %1023 = vmatpush1.xpose.msra.mxu0 0.0
        %1024 = vmatprep.subr.mxu0 0.0
        %1025 = vmatpush1.xpose.msra.mxu0 0.0
        %1026 = vmatprep.subr.mxu0 0.0
        %1027 = vmatpush1.xpose.msra.mxu0 0.0
        %1028 = vmatprep.subr.mxu0 0.0
        %1029 = vmatpush1.xpose.msra.mxu0 0.0
        %1030 = vmatprep.subr.mxu0 0.0
        %1031 = vmatpush1.xpose.msra.mxu0 0.0
        %1032 = vmatprep.subr.mxu0 0.0
        %1033 = vmatpush1.xpose.msra.mxu0 0.0
        %1034 = vmatprep.subr.mxu0 0.0
        %1035 = vmatpush1.xpose.msra.mxu0 %v717
        %1036 = vmatprep.subr.mxu0 0.0
        %1037 = vmatpush1.xpose.msra.mxu0 %v714
        %1038 = vmatprep.subr.mxu0 0.0
        %1039 = vmatpush2.xpose.msra.mxu0 0.0
        %1040 = vmatprep.subr.mxu0 0.0
        %1041 = vmatpush2.xpose.msra.mxu0 0.0
        %1042 = vmatprep.subr.mxu0 0.0
        %1043 = vmatpush2.xpose.msra.mxu0 0.0
        %1044 = vmatprep.subr.mxu0 0.0
        %1045 = vmatpush2.xpose.msra.mxu0 0.0
        %1046 = vmatprep.subr.mxu0 0.0
        %1047 = vmatpush2.xpose.msra.mxu0 0.0
        %1048 = vmatprep.subr.mxu0 0.0
        %1049 = vmatpush2.xpose.msra.mxu0 0.0
        %1050 = vmatprep.subr.mxu0 0.0
        %1051 = vmatpush2.xpose.msra.mxu0 0.0
        %1052 = vmatprep.subr.mxu0 0.0
        %1053 = vmatpush2.xpose.msra.mxu0 0.0
        %1054 = vmatprep.subr.mxu0 0.0
        %1055 = vmatpush2.xpose.msra.mxu0 0.0
        %1056 = vmatprep.subr.mxu0 0.0
        %1057 = vmatpush2.xpose.msra.mxu0 0.0
        %1058 = vmatprep.subr.mxu0 0.0
        %1059 = vmatpush2.xpose.msra.mxu0 0.0
        %1060 = vmatprep.subr.mxu0 0.0
        %1061 = vmatpush2.xpose.msra.mxu0 0.0
        %1062 = vmatprep.subr.mxu0 0.0
        %1063 = vmatpush2.xpose.msra.mxu0 0.0
        %1064 = vmatprep.subr.mxu0 0.0
        %1065 = vmatpush2.xpose.msra.mxu0 0.0
        %1066 = vmatprep.subr.mxu0 0.0
        %1067 = vmatpush2.xpose.msra.mxu0 0.0
        %1068 = vmatprep.subr.mxu0 0.0
        %1069 = vmatpush2.xpose.msra.mxu0 0.0
        %1070 = vmatprep.mubr.f32.mxu0 0.0
        %1071 = vmatmul.mubr.f32.gmra.mxu0 %v1001
        %v1072 = vpop.f32.mrf.mxu0
        %v1073 = vadd.f32 0.0, %v1072
        %v1074 = vpop.f32.mrf.mxu0
        %1075 = vmatprep.mubr.f32.mxu0 0.0
        %1076 = vmatmul.mubr.f32.gmra.mxu0 %v1004
        %v1077 = vpop.f32.mrf.mxu0
        %v1078 = vadd.f32 0.0, %v1077
        %v1079 = vpop.f32.mrf.mxu0
        %1080 = vdwg.mxu0
        %v1082 = vsel %vm567, %v822, 0
        %v1085 = vsel %vm567, %v827, 0
        %1087 = vmatprep.subr.mxu0 0.0
        %1088 = vmatpush1.xpose.msra.mxu0 0.0
        %1089 = vmatprep.subr.mxu0 0.0
        %1090 = vmatpush1.xpose.msra.mxu0 0.0
        %1091 = vmatprep.subr.mxu0 0.0
        %1092 = vmatpush1.xpose.msra.mxu0 0.0
        %1093 = vmatprep.subr.mxu0 0.0
        %1094 = vmatpush1.xpose.msra.mxu0 0.0
        %1095 = vmatprep.subr.mxu0 0.0
        %1096 = vmatpush1.xpose.msra.mxu0 0.0
        %1097 = vmatprep.subr.mxu0 0.0
        %1098 = vmatpush1.xpose.msra.mxu0 0.0
        %1099 = vmatprep.subr.mxu0 0.0
        %1100 = vmatpush1.xpose.msra.mxu0 0.0
        %1101 = vmatprep.subr.mxu0 0.0
        %1102 = vmatpush1.xpose.msra.mxu0 0.0
        %1103 = vmatprep.subr.mxu0 0.0
        %1104 = vmatpush1.xpose.msra.mxu0 0.0
        %1105 = vmatprep.subr.mxu0 0.0
        %1106 = vmatpush1.xpose.msra.mxu0 0.0
        %1107 = vmatprep.subr.mxu0 0.0
        %1108 = vmatpush1.xpose.msra.mxu0 0.0
        %1109 = vmatprep.subr.mxu0 0.0
        %1110 = vmatpush1.xpose.msra.mxu0 0.0
        %1111 = vmatprep.subr.mxu0 0.0
        %1112 = vmatpush1.xpose.msra.mxu0 0.0
        %1113 = vmatprep.subr.mxu0 0.0
        %1114 = vmatpush1.xpose.msra.mxu0 0.0
        %1115 = vmatprep.subr.mxu0 0.0
        %1116 = vmatpush1.xpose.msra.mxu0 %v723
        %1117 = vmatprep.subr.mxu0 0.0
        %1118 = vmatpush1.xpose.msra.mxu0 %v720
        %1119 = vmatprep.subr.mxu0 0.0
        %1120 = vmatpush2.xpose.msra.mxu0 0.0
        %1121 = vmatprep.subr.mxu0 0.0
        %1122 = vmatpush2.xpose.msra.mxu0 0.0
        %1123 = vmatprep.subr.mxu0 0.0
        %1124 = vmatpush2.xpose.msra.mxu0 0.0
        %1125 = vmatprep.subr.mxu0 0.0
        %1126 = vmatpush2.xpose.msra.mxu0 0.0
        %1127 = vmatprep.subr.mxu0 0.0
        %1128 = vmatpush2.xpose.msra.mxu0 0.0
        %1129 = vmatprep.subr.mxu0 0.0
        %1130 = vmatpush2.xpose.msra.mxu0 0.0
        %1131 = vmatprep.subr.mxu0 0.0
        %1132 = vmatpush2.xpose.msra.mxu0 0.0
        %1133 = vmatprep.subr.mxu0 0.0
        %1134 = vmatpush2.xpose.msra.mxu0 0.0
        %1135 = vmatprep.subr.mxu0 0.0
        %1136 = vmatpush2.xpose.msra.mxu0 0.0
        %1137 = vmatprep.subr.mxu0 0.0
        %1138 = vmatpush2.xpose.msra.mxu0 0.0
        %1139 = vmatprep.subr.mxu0 0.0
        %1140 = vmatpush2.xpose.msra.mxu0 0.0
        %1141 = vmatprep.subr.mxu0 0.0
        %1142 = vmatpush2.xpose.msra.mxu0 0.0
        %1143 = vmatprep.subr.mxu0 0.0
        %1144 = vmatpush2.xpose.msra.mxu0 0.0
        %1145 = vmatprep.subr.mxu0 0.0
        %1146 = vmatpush2.xpose.msra.mxu0 0.0
        %1147 = vmatprep.subr.mxu0 0.0
        %1148 = vmatpush2.xpose.msra.mxu0 0.0
        %1149 = vmatprep.subr.mxu0 0.0
        %1150 = vmatpush2.xpose.msra.mxu0 0.0
        %1151 = vmatprep.mubr.f32.mxu0 0.0
        %1152 = vmatmul.mubr.f32.gmra.mxu0 %v1082
        %v1153 = vpop.f32.mrf.mxu0
        %v1154 = vadd.f32 0.0, %v1153
        %v1155 = vpop.f32.mrf.mxu0
        %1156 = vmatprep.mubr.f32.mxu0 0.0
        %1157 = vmatmul.mubr.f32.gmra.mxu0 %v1085
        %v1158 = vpop.f32.mrf.mxu0
        %v1159 = vadd.f32 0.0, %v1158
        %v1160 = vpop.f32.mrf.mxu0
        %1161 = vdwg.mxu0
        %vm1162 = vcmp.gt.f32.partialorder %v830, 0.0
        %vm1163 = vcmp.gt.f32.partialorder %v831, 0.0
        %vm1164 = vcmp.gt.f32.partialorder %v832, 0.0
        %vm1165 = vcmp.gt.f32.partialorder %v833, 0.0
        %vm1166 = vcmp.gt.f32.partialorder %v834, 0.0
        %vm1167 = vcmp.gt.f32.partialorder %v835, 0.0
        %vm1168 = vcmp.gt.f32.partialorder %v836, 0.0
        %vm1169 = vcmp.gt.f32.partialorder %v837, 0.0
        %v1170 = vsel %vm1162, %v911, -9e+15
        %v1171 = vsel %vm1163, %v916, -9e+15
        %v1172 = vsel %vm1164, %v992, -9e+15
        %v1173 = vsel %vm1165, %v997, -9e+15
        %v1174 = vsel %vm1166, %v1073, -9e+15
        %v1175 = vsel %vm1167, %v1078, -9e+15
        %v1176 = vsel %vm1168, %v1154, -9e+15
        %v1177 = vsel %vm1169, %v1159, -9e+15
        %v1178 = vsel %vm428, %v1170, -inf
        %v1179 = vsel %vm428, %v1171, -inf
        %v1180 = vmax.f32 %v1178, %v1179
        %v1181 = vrot.slane %v1180, 4
        %v1182 = vmax.f32 %v1180, %v1181
        %v1183 = vrot.slane %v1182, 2
        %v1184 = vmax.f32 %v1182, %v1183
        %v1185 = vrot.slane %v1184, 1
        %v1186 = vmax.f32 %v1184, %v1185
        %v1187 = vsel %vm428, %v1172, -inf
        %v1188 = vsel %vm428, %v1173, -inf
        %v1189 = vmax.f32 %v1187, %v1188
        %v1190 = vrot.slane %v1189, 4
        %v1191 = vmax.f32 %v1189, %v1190
        %v1192 = vrot.slane %v1191, 2
        %v1193 = vmax.f32 %v1191, %v1192
        %v1194 = vrot.slane %v1193, 1
        %v1195 = vmax.f32 %v1193, %v1194
        %v1196 = vsel %vm428, %v1174, -inf
        %v1197 = vsel %vm428, %v1175, -inf
        %v1198 = vmax.f32 %v1196, %v1197
        %v1199 = vrot.slane %v1198, 4
        %v1200 = vmax.f32 %v1198, %v1199
        %v1201 = vrot.slane %v1200, 2
        %v1202 = vmax.f32 %v1200, %v1201
        %v1203 = vrot.slane %v1202, 1
        %v1204 = vmax.f32 %v1202, %v1203
        %v1205 = vsel %vm428, %v1176, -inf
        %v1206 = vsel %vm428, %v1177, -inf
        %v1207 = vmax.f32 %v1205, %v1206
        %v1208 = vrot.slane %v1207, 4
        %v1209 = vmax.f32 %v1207, %v1208
        %v1210 = vrot.slane %v1209, 2
        %v1211 = vmax.f32 %v1209, %v1210
        %v1212 = vrot.slane %v1211, 1
        %v1213 = vmax.f32 %v1211, %v1212
        %v1214 = vsub.f32 %v1170, %v1186
        %v1215 = vsub.f32 %v1171, %v1186
        %v1216 = vsub.f32 %v1172, %v1195
        %v1217 = vsub.f32 %v1173, %v1195
        %v1218 = vsub.f32 %v1174, %v1204
        %v1219 = vsub.f32 %v1175, %v1204
        %v1220 = vsub.f32 %v1176, %v1213
        %v1221 = vsub.f32 %v1177, %v1213
        %v1222 = vmul.f32 %v1214, 1.442695
        %v1223 = vpow.pop %v1222
        %v1224 = vmul.f32 %v1215, 1.442695
        %v1225 = vpow.pop %v1224
        %v1226 = vmul.f32 %v1216, 1.442695
        %v1227 = vpow.pop %v1226
        %v1228 = vmul.f32 %v1217, 1.442695
        %v1229 = vpow.pop %v1228
        %v1230 = vmul.f32 %v1218, 1.442695
        %v1231 = vpow.pop %v1230
        %v1232 = vmul.f32 %v1219, 1.442695
        %v1233 = vpow.pop %v1232
        %v1234 = vmul.f32 %v1220, 1.442695
        %v1235 = vpow.pop %v1234
        %v1236 = vmul.f32 %v1221, 1.442695
        %v1237 = vpow.pop %v1236
        %v1238 = vsel %vm428, %v1223, 0.0
        %v1239 = vsel %vm428, %v1225, 0.0
        %v1240 = vadd.f32 %v1238, %v1239
        %v1241 = vrot.slane %v1240, 4
        %v1242 = vadd.f32 %v1240, %v1241
        %v1243 = vrot.slane %v1242, 2
        %v1244 = vadd.f32 %v1242, %v1243
        %v1245 = vrot.slane %v1244, 1
        %v1246 = vadd.f32 %v1244, %v1245
        %v1247 = vsel %vm428, %v1227, 0.0
        %v1248 = vsel %vm428, %v1229, 0.0
        %v1249 = vadd.f32 %v1247, %v1248
        %v1250 = vrot.slane %v1249, 4
        %v1251 = vadd.f32 %v1249, %v1250
        %v1252 = vrot.slane %v1251, 2
        %v1253 = vadd.f32 %v1251, %v1252
        %v1254 = vrot.slane %v1253, 1
        %v1255 = vadd.f32 %v1253, %v1254
        %v1256 = vsel %vm428, %v1231, 0.0
        %v1257 = vsel %vm428, %v1233, 0.0
        %v1258 = vadd.f32 %v1256, %v1257
        %v1259 = vrot.slane %v1258, 4
        %v1260 = vadd.f32 %v1258, %v1259
        %v1261 = vrot.slane %v1260, 2
        %v1262 = vadd.f32 %v1260, %v1261
        %v1263 = vrot.slane %v1262, 1
        %v1264 = vadd.f32 %v1262, %v1263
        %v1265 = vsel %vm428, %v1235, 0.0
        %v1266 = vsel %vm428, %v1237, 0.0
        %v1267 = vadd.f32 %v1265, %v1266
        %v1268 = vrot.slane %v1267, 4
        %v1269 = vadd.f32 %v1267, %v1268
        %v1270 = vrot.slane %v1269, 2
        %v1271 = vadd.f32 %v1269, %v1270
        %v1272 = vrot.slane %v1271, 1
        %v1273 = vadd.f32 %v1271, %v1272
        %v1274 = vrcp.pop %v1246
        %v1275 = vrcp.pop %v1255
        %v1276 = vrcp.pop %v1264
        %v1277 = vrcp.pop %v1273
        %v1278 = vmul.f32 %v1223, %v1274
        %v1279 = vmul.f32 %v1225, %v1274
        %v1280 = vmul.f32 %v1227, %v1275
        %v1281 = vmul.f32 %v1229, %v1275
        %v1282 = vmul.f32 %v1231, %v1276
        %v1283 = vmul.f32 %v1233, %v1276
        %v1284 = vmul.f32 %v1235, %v1277
        %v1285 = vmul.f32 %v1237, %v1277
        %v1286 = vmul.f32 %v1278, %v830
        %v1287 = vmul.f32 %v1279, %v831
        %v1288 = vmul.f32 %v1280, %v832
        %v1289 = vmul.f32 %v1281, %v833
        %v1290 = vmul.f32 %v1282, %v834
        %v1291 = vmul.f32 %v1283, %v835
        %v1292 = vmul.f32 %v1284, %v836
        %v1293 = vmul.f32 %v1285, %v837
        %v1295 = vsel %vm428, %v1286, 0
        %v1298 = vsel %vm428, %v1287, 0
        %1300 = vmatprep.subr.mxu0 0.0
        %1301 = vmatpush1.msra.mxu0 0.0
        %1302 = vmatprep.subr.mxu0 0.0
        %1303 = vmatpush1.msra.mxu0 0.0
        %1304 = vmatprep.subr.mxu0 0.0
        %1305 = vmatpush1.msra.mxu0 0.0
        %1306 = vmatprep.subr.mxu0 0.0
        %1307 = vmatpush1.msra.mxu0 0.0
        %1308 = vmatprep.subr.mxu0 0.0
        %1309 = vmatpush1.msra.mxu0 0.0
        %1310 = vmatprep.subr.mxu0 0.0
        %1311 = vmatpush1.msra.mxu0 0.0
        %1312 = vmatprep.subr.mxu0 0.0
        %1313 = vmatpush1.msra.mxu0 0.0
        %1314 = vmatprep.subr.mxu0 0.0
        %1315 = vmatpush1.msra.mxu0 0.0
        %1316 = vmatprep.subr.mxu0 0.0
        %1317 = vmatpush1.msra.mxu0 0.0
        %1318 = vmatprep.subr.mxu0 0.0
        %1319 = vmatpush1.msra.mxu0 0.0
        %1320 = vmatprep.subr.mxu0 0.0
        %1321 = vmatpush1.msra.mxu0 0.0
        %1322 = vmatprep.subr.mxu0 0.0
        %1323 = vmatpush1.msra.mxu0 0.0
        %1324 = vmatprep.subr.mxu0 0.0
        %1325 = vmatpush1.msra.mxu0 0.0
        %1326 = vmatprep.subr.mxu0 0.0
        %1327 = vmatpush1.msra.mxu0 0.0
        %1328 = vmatprep.subr.mxu0 0.0
        %1329 = vmatpush1.msra.mxu0 %v664
        %1330 = vmatprep.subr.mxu0 0.0
        %1331 = vmatpush1.msra.mxu0 %v659
        %1332 = vmatprep.subr.mxu0 0.0
        %1333 = vmatpush2.msra.mxu0 0.0
        %1334 = vmatprep.subr.mxu0 0.0
        %1335 = vmatpush2.msra.mxu0 0.0
        %1336 = vmatprep.subr.mxu0 0.0
        %1337 = vmatpush2.msra.mxu0 0.0
        %1338 = vmatprep.subr.mxu0 0.0
        %1339 = vmatpush2.msra.mxu0 0.0
        %1340 = vmatprep.subr.mxu0 0.0
        %1341 = vmatpush2.msra.mxu0 0.0
        %1342 = vmatprep.subr.mxu0 0.0
        %1343 = vmatpush2.msra.mxu0 0.0
        %1344 = vmatprep.subr.mxu0 0.0
        %1345 = vmatpush2.msra.mxu0 0.0
        %1346 = vmatprep.subr.mxu0 0.0
        %1347 = vmatpush2.msra.mxu0 0.0
        %1348 = vmatprep.subr.mxu0 0.0
        %1349 = vmatpush2.msra.mxu0 0.0
        %1350 = vmatprep.subr.mxu0 0.0
        %1351 = vmatpush2.msra.mxu0 0.0
        %1352 = vmatprep.subr.mxu0 0.0
        %1353 = vmatpush2.msra.mxu0 0.0
        %1354 = vmatprep.subr.mxu0 0.0
        %1355 = vmatpush2.msra.mxu0 0.0
        %1356 = vmatprep.subr.mxu0 0.0
        %1357 = vmatpush2.msra.mxu0 0.0
        %1358 = vmatprep.subr.mxu0 0.0
        %1359 = vmatpush2.msra.mxu0 0.0
        %1360 = vmatprep.subr.mxu0 0.0
        %1361 = vmatpush2.msra.mxu0 0.0
        %1362 = vmatprep.subr.mxu0 0.0
        %1363 = vmatpush2.msra.mxu0 0.0
        %1364 = vmatprep.mubr.f32.mxu0 0.0
        %1365 = vmatmul.mubr.f32.gmra.mxu0 %v1295
        %v1366 = vpop.f32.mrf.mxu0
        %v1367 = vadd.f32 0.0, %v1366
        %v1368 = vpop.f32.mrf.mxu0
        %1369 = vmatprep.mubr.f32.mxu0 0.0
        %1370 = vmatmul.mubr.f32.gmra.mxu0 %v1298
        %v1371 = vpop.f32.mrf.mxu0
        %v1372 = vadd.f32 0.0, %v1371
        %v1373 = vpop.f32.mrf.mxu0
        %1374 = vdwg.mxu0
        %v1376 = vsel %vm428, %v1288, 0
        %v1379 = vsel %vm428, %v1289, 0
        %1381 = vmatprep.subr.mxu0 0.0
        %1382 = vmatpush1.msra.mxu0 0.0
        %1383 = vmatprep.subr.mxu0 0.0
        %1384 = vmatpush1.msra.mxu0 0.0
        %1385 = vmatprep.subr.mxu0 0.0
        %1386 = vmatpush1.msra.mxu0 0.0
        %1387 = vmatprep.subr.mxu0 0.0
        %1388 = vmatpush1.msra.mxu0 0.0
        %1389 = vmatprep.subr.mxu0 0.0
        %1390 = vmatpush1.msra.mxu0 0.0
        %1391 = vmatprep.subr.mxu0 0.0
        %1392 = vmatpush1.msra.mxu0 0.0
        %1393 = vmatprep.subr.mxu0 0.0
        %1394 = vmatpush1.msra.mxu0 0.0
        %1395 = vmatprep.subr.mxu0 0.0
        %1396 = vmatpush1.msra.mxu0 0.0
        %1397 = vmatprep.subr.mxu0 0.0
        %1398 = vmatpush1.msra.mxu0 0.0
        %1399 = vmatprep.subr.mxu0 0.0
        %1400 = vmatpush1.msra.mxu0 0.0
        %1401 = vmatprep.subr.mxu0 0.0
        %1402 = vmatpush1.msra.mxu0 0.0
        %1403 = vmatprep.subr.mxu0 0.0
        %1404 = vmatpush1.msra.mxu0 0.0
        %1405 = vmatprep.subr.mxu0 0.0
        %1406 = vmatpush1.msra.mxu0 0.0
        %1407 = vmatprep.subr.mxu0 0.0
        %1408 = vmatpush1.msra.mxu0 0.0
        %1409 = vmatprep.subr.mxu0 0.0
        %1410 = vmatpush1.msra.mxu0 %v674
        %1411 = vmatprep.subr.mxu0 0.0
        %1412 = vmatpush1.msra.mxu0 %v669
        %1413 = vmatprep.subr.mxu0 0.0
        %1414 = vmatpush2.msra.mxu0 0.0
        %1415 = vmatprep.subr.mxu0 0.0
        %1416 = vmatpush2.msra.mxu0 0.0
        %1417 = vmatprep.subr.mxu0 0.0
        %1418 = vmatpush2.msra.mxu0 0.0
        %1419 = vmatprep.subr.mxu0 0.0
        %1420 = vmatpush2.msra.mxu0 0.0
        %1421 = vmatprep.subr.mxu0 0.0
        %1422 = vmatpush2.msra.mxu0 0.0
        %1423 = vmatprep.subr.mxu0 0.0
        %1424 = vmatpush2.msra.mxu0 0.0
        %1425 = vmatprep.subr.mxu0 0.0
        %1426 = vmatpush2.msra.mxu0 0.0
        %1427 = vmatprep.subr.mxu0 0.0
        %1428 = vmatpush2.msra.mxu0 0.0
        %1429 = vmatprep.subr.mxu0 0.0
        %1430 = vmatpush2.msra.mxu0 0.0
        %1431 = vmatprep.subr.mxu0 0.0
        %1432 = vmatpush2.msra.mxu0 0.0
        %1433 = vmatprep.subr.mxu0 0.0
        %1434 = vmatpush2.msra.mxu0 0.0
        %1435 = vmatprep.subr.mxu0 0.0
        %1436 = vmatpush2.msra.mxu0 0.0
        %1437 = vmatprep.subr.mxu0 0.0
        %1438 = vmatpush2.msra.mxu0 0.0
        %1439 = vmatprep.subr.mxu0 0.0
        %1440 = vmatpush2.msra.mxu0 0.0
        %1441 = vmatprep.subr.mxu0 0.0
        %1442 = vmatpush2.msra.mxu0 0.0
        %1443 = vmatprep.subr.mxu0 0.0
        %1444 = vmatpush2.msra.mxu0 0.0
        %1445 = vmatprep.mubr.f32.mxu0 0.0
        %1446 = vmatmul.mubr.f32.gmra.mxu0 %v1376
        %v1447 = vpop.f32.mrf.mxu0
        %v1448 = vadd.f32 0.0, %v1447
        %v1449 = vpop.f32.mrf.mxu0
        %1450 = vmatprep.mubr.f32.mxu0 0.0
        %1451 = vmatmul.mubr.f32.gmra.mxu0 %v1379
        %v1452 = vpop.f32.mrf.mxu0
        %v1453 = vadd.f32 0.0, %v1452
        %v1454 = vpop.f32.mrf.mxu0
        %1455 = vdwg.mxu0
        %v1457 = vsel %vm428, %v1290, 0
        %v1460 = vsel %vm428, %v1291, 0
        %1462 = vmatprep.subr.mxu0 0.0
        %1463 = vmatpush1.msra.mxu0 0.0
        %1464 = vmatprep.subr.mxu0 0.0
        %1465 = vmatpush1.msra.mxu0 0.0
        %1466 = vmatprep.subr.mxu0 0.0
        %1467 = vmatpush1.msra.mxu0 0.0
        %1468 = vmatprep.subr.mxu0 0.0
        %1469 = vmatpush1.msra.mxu0 0.0
        %1470 = vmatprep.subr.mxu0 0.0
        %1471 = vmatpush1.msra.mxu0 0.0
        %1472 = vmatprep.subr.mxu0 0.0
        %1473 = vmatpush1.msra.mxu0 0.0
        %1474 = vmatprep.subr.mxu0 0.0
        %1475 = vmatpush1.msra.mxu0 0.0
        %1476 = vmatprep.subr.mxu0 0.0
        %1477 = vmatpush1.msra.mxu0 0.0
        %1478 = vmatprep.subr.mxu0 0.0
        %1479 = vmatpush1.msra.mxu0 0.0
        %1480 = vmatprep.subr.mxu0 0.0
        %1481 = vmatpush1.msra.mxu0 0.0
        %1482 = vmatprep.subr.mxu0 0.0
        %1483 = vmatpush1.msra.mxu0 0.0
        %1484 = vmatprep.subr.mxu0 0.0
        %1485 = vmatpush1.msra.mxu0 0.0
        %1486 = vmatprep.subr.mxu0 0.0
        %1487 = vmatpush1.msra.mxu0 0.0
        %1488 = vmatprep.subr.mxu0 0.0
        %1489 = vmatpush1.msra.mxu0 0.0
        %1490 = vmatprep.subr.mxu0 0.0
        %1491 = vmatpush1.msra.mxu0 %v684
        %1492 = vmatprep.subr.mxu0 0.0
        %1493 = vmatpush1.msra.mxu0 %v679
        %1494 = vmatprep.subr.mxu0 0.0
        %1495 = vmatpush2.msra.mxu0 0.0
        %1496 = vmatprep.subr.mxu0 0.0
        %1497 = vmatpush2.msra.mxu0 0.0
        %1498 = vmatprep.subr.mxu0 0.0
        %1499 = vmatpush2.msra.mxu0 0.0
        %1500 = vmatprep.subr.mxu0 0.0
        %1501 = vmatpush2.msra.mxu0 0.0
        %1502 = vmatprep.subr.mxu0 0.0
        %1503 = vmatpush2.msra.mxu0 0.0
        %1504 = vmatprep.subr.mxu0 0.0
        %1505 = vmatpush2.msra.mxu0 0.0
        %1506 = vmatprep.subr.mxu0 0.0
        %1507 = vmatpush2.msra.mxu0 0.0
        %1508 = vmatprep.subr.mxu0 0.0
        %1509 = vmatpush2.msra.mxu0 0.0
        %1510 = vmatprep.subr.mxu0 0.0
        %1511 = vmatpush2.msra.mxu0 0.0
        %1512 = vmatprep.subr.mxu0 0.0
        %1513 = vmatpush2.msra.mxu0 0.0
        %1514 = vmatprep.subr.mxu0 0.0
        %1515 = vmatpush2.msra.mxu0 0.0
        %1516 = vmatprep.subr.mxu0 0.0
        %1517 = vmatpush2.msra.mxu0 0.0
        %1518 = vmatprep.subr.mxu0 0.0
        %1519 = vmatpush2.msra.mxu0 0.0
        %1520 = vmatprep.subr.mxu0 0.0
        %1521 = vmatpush2.msra.mxu0 0.0
        %1522 = vmatprep.subr.mxu0 0.0
        %1523 = vmatpush2.msra.mxu0 0.0
        %1524 = vmatprep.subr.mxu0 0.0
        %1525 = vmatpush2.msra.mxu0 0.0
        %1526 = vmatprep.mubr.f32.mxu0 0.0
        %1527 = vmatmul.mubr.f32.gmra.mxu0 %v1457
        %v1528 = vpop.f32.mrf.mxu0
        %v1529 = vadd.f32 0.0, %v1528
        %v1530 = vpop.f32.mrf.mxu0
        %1531 = vmatprep.mubr.f32.mxu0 0.0
        %1532 = vmatmul.mubr.f32.gmra.mxu0 %v1460
        %v1533 = vpop.f32.mrf.mxu0
        %v1534 = vadd.f32 0.0, %v1533
        %v1535 = vpop.f32.mrf.mxu0
        %1536 = vdwg.mxu0
        %v1538 = vsel %vm428, %v1292, 0
        %v1541 = vsel %vm428, %v1293, 0
        %1543 = vmatprep.subr.mxu0 0.0
        %1544 = vmatpush1.msra.mxu0 0.0
        %1545 = vmatprep.subr.mxu0 0.0
        %1546 = vmatpush1.msra.mxu0 0.0
        %1547 = vmatprep.subr.mxu0 0.0
        %1548 = vmatpush1.msra.mxu0 0.0
        %1549 = vmatprep.subr.mxu0 0.0
        %1550 = vmatpush1.msra.mxu0 0.0
        %1551 = vmatprep.subr.mxu0 0.0
        %1552 = vmatpush1.msra.mxu0 0.0
        %1553 = vmatprep.subr.mxu0 0.0
        %1554 = vmatpush1.msra.mxu0 0.0
        %1555 = vmatprep.subr.mxu0 0.0
        %1556 = vmatpush1.msra.mxu0 0.0
        %1557 = vmatprep.subr.mxu0 0.0
        %1558 = vmatpush1.msra.mxu0 0.0
        %1559 = vmatprep.subr.mxu0 0.0
        %1560 = vmatpush1.msra.mxu0 0.0
        %1561 = vmatprep.subr.mxu0 0.0
        %1562 = vmatpush1.msra.mxu0 0.0
        %1563 = vmatprep.subr.mxu0 0.0
        %1564 = vmatpush1.msra.mxu0 0.0
        %1565 = vmatprep.subr.mxu0 0.0
        %1566 = vmatpush1.msra.mxu0 0.0
        %1567 = vmatprep.subr.mxu0 0.0
        %1568 = vmatpush1.msra.mxu0 0.0
        %1569 = vmatprep.subr.mxu0 0.0
        %1570 = vmatpush1.msra.mxu0 0.0
        %1571 = vmatprep.subr.mxu0 0.0
        %1572 = vmatpush1.msra.mxu0 %v694
        %1573 = vmatprep.subr.mxu0 0.0
        %1574 = vmatpush1.msra.mxu0 %v689
        %1575 = vmatprep.subr.mxu0 0.0
        %1576 = vmatpush2.msra.mxu0 0.0
        %1577 = vmatprep.subr.mxu0 0.0
        %1578 = vmatpush2.msra.mxu0 0.0
        %1579 = vmatprep.subr.mxu0 0.0
        %1580 = vmatpush2.msra.mxu0 0.0
        %1581 = vmatprep.subr.mxu0 0.0
        %1582 = vmatpush2.msra.mxu0 0.0
        %1583 = vmatprep.subr.mxu0 0.0
        %1584 = vmatpush2.msra.mxu0 0.0
        %1585 = vmatprep.subr.mxu0 0.0
        %1586 = vmatpush2.msra.mxu0 0.0
        %1587 = vmatprep.subr.mxu0 0.0
        %1588 = vmatpush2.msra.mxu0 0.0
        %1589 = vmatprep.subr.mxu0 0.0
        %1590 = vmatpush2.msra.mxu0 0.0
        %1591 = vmatprep.subr.mxu0 0.0
        %1592 = vmatpush2.msra.mxu0 0.0
        %1593 = vmatprep.subr.mxu0 0.0
        %1594 = vmatpush2.msra.mxu0 0.0
        %1595 = vmatprep.subr.mxu0 0.0
        %1596 = vmatpush2.msra.mxu0 0.0
        %1597 = vmatprep.subr.mxu0 0.0
        %1598 = vmatpush2.msra.mxu0 0.0
        %1599 = vmatprep.subr.mxu0 0.0
        %1600 = vmatpush2.msra.mxu0 0.0
        %1601 = vmatprep.subr.mxu0 0.0
        %1602 = vmatpush2.msra.mxu0 0.0
        %1603 = vmatprep.subr.mxu0 0.0
        %1604 = vmatpush2.msra.mxu0 0.0
        %1605 = vmatprep.subr.mxu0 0.0
        %1606 = vmatpush2.msra.mxu0 0.0
        %1607 = vmatprep.mubr.f32.mxu0 0.0
        %1608 = vmatmul.mubr.f32.gmra.mxu0 %v1538
        %v1609 = vpop.f32.mrf.mxu0
        %v1610 = vadd.f32 0.0, %v1609
        %v1611 = vpop.f32.mrf.mxu0
        %1612 = vmatprep.mubr.f32.mxu0 0.0
        %1613 = vmatmul.mubr.f32.gmra.mxu0 %v1541
        %v1614 = vpop.f32.mrf.mxu0
        %v1615 = vadd.f32 0.0, %v1614
        %v1616 = vpop.f32.mrf.mxu0
        %1617 = vdwg.mxu0
        %v1618 = vmax.f32 %v1367, 0.0
        %v1619 = vmax.f32 %v1372, 0.0
        %v1620 = vmax.f32 %v1448, 0.0
        %v1621 = vmax.f32 %v1453, 0.0
        %v1622 = vmax.f32 %v1529, 0.0
        %v1623 = vmax.f32 %v1534, 0.0
        %v1624 = vmax.f32 %v1610, 0.0
        %v1625 = vmax.f32 %v1615, 0.0
        %v1626 = vld [vmem:[%s6] sm:$0x1]
        %v1627 = vlaneseq
        %v1628 = vshrl.u32 %v1627, 7
        %v1629 = vsub.s32 0, %v1628
        %v1630 = vrot.slane %v1626, %v1629
        %v1631 = vmul.f32 %v520, %v1630
        %v1632 = vmul.f32 %v525, %v1630
        %v1633 = vmul.f32 %v530, %v1630
        %v1634 = vmul.f32 %v535, %v1630
        %v1635 = vmul.f32 %v540, %v1630
        %v1636 = vmul.f32 %v545, %v1630
        %v1637 = vmul.f32 %v550, %v1630
        %v1638 = vmul.f32 %v555, %v1630
        %v1639 = vld [vmem:[%s6 + $0x1] sm:$0x1]
        %v1640 = vlaneseq
        %v1641 = vshrl.u32 %v1640, 7
        %v1642 = vsub.s32 0, %v1641
        %v1643 = vrot.slane %v1639, %v1642
        %v1644 = vmul.f32 %v1618, %v1643
        %v1645 = vmul.f32 %v1619, %v1643
        %v1646 = vmul.f32 %v1620, %v1643
        %v1647 = vmul.f32 %v1621, %v1643
        %v1648 = vmul.f32 %v1622, %v1643
        %v1649 = vmul.f32 %v1623, %v1643
        %v1650 = vmul.f32 %v1624, %v1643
        %v1651 = vmul.f32 %v1625, %v1643
        %v1652 = vadd.f32 %v1631, %v1644
        %v1653 = vadd.f32 %v1632, %v1645
        %v1654 = vadd.f32 %v1633, %v1646
        %v1655 = vadd.f32 %v1634, %v1647
        %v1656 = vadd.f32 %v1635, %v1648
        %v1657 = vadd.f32 %v1636, %v1649
        %v1658 = vadd.f32 %v1637, %v1650
        %v1659 = vadd.f32 %v1638, %v1651
        %v1660 = vsel %vm567, %v1652, 0.0
        %1661 = vadd.xlane.f32.xlu0 %v1660
        %v1662 = vpop.xlane.xlu0 %1661
        %v1663 = vsel %vm567, %v1653, 0.0
        %1664 = vadd.xlane.f32.xlu0 %v1663
        %v1665 = vpop.xlane.xlu0 %1664
        %v1666 = vsel %vm567, %v1654, 0.0
        %1667 = vadd.xlane.f32.xlu0 %v1666
        %v1668 = vpop.xlane.xlu0 %1667
        %v1669 = vsel %vm567, %v1655, 0.0
        %1670 = vadd.xlane.f32.xlu0 %v1669
        %v1671 = vpop.xlane.xlu0 %1670
        %v1672 = vsel %vm567, %v1656, 0.0
        %1673 = vadd.xlane.f32.xlu0 %v1672
        %v1674 = vpop.xlane.xlu0 %1673
        %v1675 = vsel %vm567, %v1657, 0.0
        %1676 = vadd.xlane.f32.xlu0 %v1675
        %v1677 = vpop.xlane.xlu0 %1676
        %v1678 = vsel %vm567, %v1658, 0.0
        %1679 = vadd.xlane.f32.xlu0 %v1678
        %v1680 = vpop.xlane.xlu0 %1679
        %v1681 = vsel %vm567, %v1659, 0.0
        %1682 = vadd.xlane.f32.xlu0 %v1681
        %v1683 = vpop.xlane.xlu0 %1682
        %s1684 = sld [smem:[#allocation2]]
        %v1685 = vstv %s1684
        %v1686 = vadd.f32 %v1662, %v1685
        %v1687 = vadd.f32 %v1665, %v1685
        %v1688 = vadd.f32 %v1668, %v1685
        %v1689 = vadd.f32 %v1671, %v1685
        %v1690 = vadd.f32 %v1674, %v1685
        %v1691 = vadd.f32 %v1677, %v1685
        %v1692 = vadd.f32 %v1680, %v1685
        %v1693 = vadd.f32 %v1683, %v1685
        %v1694 = vxor.u32 %v1686, 2147483648
        %v1695 = vxor.u32 %v1687, 2147483648
        %v1696 = vxor.u32 %v1688, 2147483648
        %v1697 = vxor.u32 %v1689, 2147483648
        %v1698 = vxor.u32 %v1690, 2147483648
        %v1699 = vxor.u32 %v1691, 2147483648
        %v1700 = vxor.u32 %v1692, 2147483648
        %v1701 = vxor.u32 %v1693, 2147483648
        %v1702 = vmul.f32 %v1694, 1.442695
        %v1703 = vpow.pop %v1702
        %v1704 = vmul.f32 %v1695, 1.442695
        %v1705 = vpow.pop %v1704
        %v1706 = vmul.f32 %v1696, 1.442695
        %v1707 = vpow.pop %v1706
        %v1708 = vmul.f32 %v1697, 1.442695
        %v1709 = vpow.pop %v1708
        %v1710 = vmul.f32 %v1698, 1.442695
        %v1711 = vpow.pop %v1710
        %v1712 = vmul.f32 %v1699, 1.442695
        %v1713 = vpow.pop %v1712
        %v1714 = vmul.f32 %v1700, 1.442695
        %v1715 = vpow.pop %v1714
        %v1716 = vmul.f32 %v1701, 1.442695
        %v1717 = vpow.pop %v1716
        %v1718 = vadd.f32 %v1703, 1.0
        %v1719 = vadd.f32 %v1705, 1.0
        %v1720 = vadd.f32 %v1707, 1.0
        %v1721 = vadd.f32 %v1709, 1.0
        %v1722 = vadd.f32 %v1711, 1.0
        %v1723 = vadd.f32 %v1713, 1.0
        %v1724 = vadd.f32 %v1715, 1.0
        %v1725 = vadd.f32 %v1717, 1.0
        %v1726 = vrcp.pop %v1718
        %v1727 = vmul.f32 1.0, %v1726
        %v1728 = vrcp.pop %v1719
        %v1729 = vmul.f32 1.0, %v1728
        %v1730 = vrcp.pop %v1720
        %v1731 = vmul.f32 1.0, %v1730
        %v1732 = vrcp.pop %v1721
        %v1733 = vmul.f32 1.0, %v1732
        %v1734 = vrcp.pop %v1722
        %v1735 = vmul.f32 1.0, %v1734
        %v1736 = vrcp.pop %v1723
        %v1737 = vmul.f32 1.0, %v1736
        %v1738 = vrcp.pop %v1724
        %v1739 = vmul.f32 1.0, %v1738
        %v1740 = vrcp.pop %v1725
        %v1741 = vmul.f32 1.0, %v1740
        %v1742 = vmul.f32 %v1727, %v520
        %v1743 = vmul.f32 %v1729, %v525
        %v1744 = vmul.f32 %v1731, %v530
        %v1745 = vmul.f32 %v1733, %v535
        %v1746 = vmul.f32 %v1735, %v540
        %v1747 = vmul.f32 %v1737, %v545
        %v1748 = vmul.f32 %v1739, %v550
        %v1749 = vmul.f32 %v1741, %v555
        %v1750 = vsub.f32 1.0, %v1727
        %v1751 = vsub.f32 1.0, %v1729
        %v1752 = vsub.f32 1.0, %v1731
        %v1753 = vsub.f32 1.0, %v1733
        %v1754 = vsub.f32 1.0, %v1735
        %v1755 = vsub.f32 1.0, %v1737
        %v1756 = vsub.f32 1.0, %v1739
        %v1757 = vsub.f32 1.0, %v1741
        %v1758 = vmul.f32 %v1750, %v1618
        %v1759 = vmul.f32 %v1751, %v1619
        %v1760 = vmul.f32 %v1752, %v1620
        %v1761 = vmul.f32 %v1753, %v1621
        %v1762 = vmul.f32 %v1754, %v1622
        %v1763 = vmul.f32 %v1755, %v1623
        %v1764 = vmul.f32 %v1756, %v1624
        %v1765 = vmul.f32 %v1757, %v1625
        %v1766 = vadd.f32 %v1742, %v1758
        %v1767 = vadd.f32 %v1743, %v1759
        %v1768 = vadd.f32 %v1744, %v1760
        %v1769 = vadd.f32 %v1745, %v1761
        %v1770 = vadd.f32 %v1746, %v1762
        %v1771 = vadd.f32 %v1747, %v1763
        %v1772 = vadd.f32 %v1748, %v1764
        %v1773 = vadd.f32 %v1749, %v1765
        %1774 = vst.msk [vmem:[%s409] sm:$0xff] %vm567, %v1766
        %1775 = vst.msk [vmem:[%s409 + $0x8] sm:$0xff] %vm567, %v1767
        %1776 = vst.msk [vmem:[%s409 + $0x10] sm:$0xff] %vm567, %v1768
        %1777 = vst.msk [vmem:[%s409 + $0x18] sm:$0xff] %vm567, %v1769
        %1778 = vst.msk [vmem:[%s409 + $0x20] sm:$0xff] %vm567, %v1770
        %1779 = vst.msk [vmem:[%s409 + $0x28] sm:$0xff] %vm567, %v1771
        %1780 = vst.msk [vmem:[%s409 + $0x30] sm:$0xff] %vm567, %v1772
        %1781 = vst.msk [vmem:[%s409 + $0x38] sm:$0xff] %vm567, %v1773
        %s1782 = sand.u32 %s216, 1
        %s1783 = scalar_lea.sflag [#allocation5], %s1782
        %s1784 = sand.u32 %s216, 1
        %s1785 = smul.addr %s1784, 64
        %s1786 = scalar_lea.vmem [#allocation12], %s1785
        // Predicated region
        $region73: #{tpu_custom_call.1} parent=51 // pred_check
          %p1787 = pneg %p226
        $region74: #{tpu_custom_call.1} parent=51 // pred_check_branch
          %1789 = sbr.rel (%p1787) target = $region76
        $region75: #{tpu_custom_call.1} parent=51 // pred_region
          %s1790 = smul.u32 4, %s30
          %s1792 = ssub.s32 1024, 1024
          %1793 = vsyncadd %s1783, %s1792
          %s1794 = smul.addr %s1790, 2
          %s1795 = smul.addr %s1794, 128
          %s1796 = scalar_lea.hbm %s8, %s1795
          %s1797 = sshll.u32 %s1786, 4
          %s1798 = int_to_ptr.vmem [resolvable:$true] %s1797
          %1803 = dma.vmem_to_hbm [thread:$0]  %s1798, 1024, %s1796, %s1783, 128, 128, 8
        $region76: #{tpu_custom_call.1} parent=51 // pred_fallthru
          _
      $region52: #{tpu_custom_call.1} parent=5 // pred_fallthru
        _
      %p1804 = scmp.le.s32.totalorder 2, %s25
      // Predicated region
      $region77: #{tpu_custom_call.1} parent=5 // pred_check
        %p1805 = pneg %p1804
      $region78: #{tpu_custom_call.1} parent=5 // pred_check_branch
        %1807 = sbr.rel (%p1805) target = $region80
      $region79: #{tpu_custom_call.1} parent=5 // pred_region
        %s1808 = ssub.s32 %s25, 2
        // Predicated region
        $region81: #{tpu_custom_call.1} parent=79 // pred_check
          %p1809 = pneg %p232
        $region82: #{tpu_custom_call.1} parent=79 // pred_check_branch
          %1811 = sbr.rel (%p1809) target = $region84
        $region83: #{tpu_custom_call.1} parent=79 // pred_region
          %s1812 = sand.u32 %s217, 1
          %s1813 = scalar_lea.sflag [#allocation5], %s1812
          %s1814 = sand.u32 %s217, 1
          %s1815 = smul.addr %s1814, 64
          %s1816 = scalar_lea.vmem [#allocation12], %s1815
          %1817 = dma.done %s1813, 1024
        $region84: #{tpu_custom_call.1} parent=79 // pred_fallthru
          _
      $region80: #{tpu_custom_call.1} parent=5 // pred_fallthru
        _
    $region6: #{tpu_custom_call.1} parent=1 // loop_footer
      %s29 = sadd.s32 1, %s25
    $region7: #{tpu_custom_call.1} parent=1 // loop_footer_branch
      %24 = sbr.rel target = $region3
    $region8: #{tpu_custom_call.1} parent=1 // loop_exit
      _
    %1818 = vsyncpa [#allocation4], 1
    %s1819 = scalar_lea.sflag [#allocation4], 1
    %1820 = vsyncpa %s1819, 1
    %1821 = vsyncpa [#allocation7], 1
    %s1822 = scalar_lea.sflag [#allocation7], 1
    %1823 = vsyncpa %s1822, 1
    %1824 = vsyncpa [#allocation10], 1
    %1825 = vsyncpa [#allocation5], 1
    %s1826 = scalar_lea.sflag [#allocation5], 1
    %1827 = vsyncpa %s1826, 1

</llo_original>
